<compile_context>
chip_gen: v7x
topology: tpu7x:2x2x1
jax: 0.10.0
libtpu: 0.0.40
codegen_flags: <defaults>
</compile_context>

<pallas_src>
import jax
import jax.numpy as jnp
from jax.experimental import pallas as pl
from jax.experimental.pallas import tpu as pltpu


def _round_up(x, m):
    return ((x + m - 1) // m) * m


def _padded_tile_bytes(shape, dtype_bytes=4):
    """Approx. VMEM bytes of one pipelined buffer of `shape` under (8,128) tiling."""
    if len(shape) == 1:
        return _round_up(shape[0] * dtype_bytes, 512)
    lead = 1
    for d in shape[:-2]:
        lead *= int(d)
    return lead * _round_up(shape[-2], 8) * _round_up(shape[-1], 128) * dtype_bytes


# ----------------------------------------------------------------------------
# Fused kernel: Nb images per grid step.
#   in-kernel im2col -> single K=9*Cin MXU contraction + bias + ReLU
#   -> per-image global average pool (sublane reduce + constant scale)
#   -> Linear head with a lane-dense (Nb, Tp) store.
# ----------------------------------------------------------------------------
def _make_fused_kernel(Nb, H, W, Cin, Cout, Tp, matmul_dtype):
    HW = H * W
    K9 = 9 * Cin
    inv_hw = 1.0 / float(HW)

    def kernel(x_ref, wc_ref, bc_ref, wf_ref, bf_ref, o_ref):
        # x_ref : (Nb, H+2, W+2, Cin)  zero-padded NHWC image tile (raw bytes;
        #                              no 9x im2col tensor ever touches HBM)
        # wc_ref: (9*Cin, Cout)        conv weight, taps flattened along K
        # bc_ref: (1, Cout)
        # wf_ref: (Cout, Tp)           fc weight, head padded to lane-dense Tp
        # bf_ref: (1, Tp)
        # o_ref : (Nb, Tp)
        x = x_ref[...]

        # In-kernel im2col: 9 statically shifted slices of the padded tile,
        # concatenated along the channel (lane) axis and flattened so the
        # whole image block is ONE (Nb*HW, 9*Cin) x (9*Cin, Cout) contraction
        # (instead of 9 tiny K=Cin matmuls or an HBM patch tensor).
        taps = [x[:, kh:kh + H, kw:kw + W, :]
                for kh in range(3) for kw in range(3)]
        patches = jnp.concatenate(taps, axis=-1).reshape(Nb * HW, K9)

        conv = jnp.dot(patches.astype(matmul_dtype),
                       wc_ref[...].astype(matmul_dtype),
                       preferred_element_type=jnp.float32)
        conv = jnp.maximum(conv + bc_ref[...], 0.0)                 # (Nb*HW, Cout)

        # Global average pool fused in-kernel: per-image sublane reduce +
        # constant scale (no per-element divide).
        pooled = jnp.sum(conv.reshape(Nb, HW, Cout), axis=1) * inv_hw   # (Nb, Cout)

        # FC head; Tp is a multiple of 128 so this is an unmasked lane-dense store.
        o_ref[...] = (
            jnp.dot(pooled.astype(matmul_dtype), wf_ref[...].astype(matmul_dtype),
                    preferred_element_type=jnp.float32)
            + bf_ref[...]
        )

    return kernel


# ----------------------------------------------------------------------------
# Wrapper: layout glue (NCHW->NHWC, pad) + single fused pallas_call.
# ----------------------------------------------------------------------------
def model_forward(image_nchw, params, *, images_per_step=None,
                  matmul_dtype=jnp.float32):
    """image_nchw: (N, Cin, H, W) float32 — PyTorch-style input layout."""
    conv_w = params["conv_w"]      # (Cout, Cin, 3, 3)  torch layout
    conv_b = params["conv_b"]      # (Cout,)
    fc_w = params["fc_w"]          # (T, Cout)          torch Linear layout
    fc_b = params["fc_b"]          # (T,)

    N, Cin, H, W = image_nchw.shape
    Cout = conv_w.shape[0]
    T = fc_w.shape[0]
    HW = H * W
    K9 = 9 * Cin

    # Images per grid step: whole batch when small; cap so one block's working
    # set stays comfortably inside VMEM at larger batches. (Nb is either == N
    # or a multiple of 8, keeping the (Nb, Tp) output block sublane-legal.)
    if images_per_step is None:
        images_per_step = N if N <= 16 else 16
    Nb = max(1, min(images_per_step, N))
    G = pl.cdiv(N, Nb)
    N_pad = G * Nb

    # Lane-dense head: pad target_size up to a full 128-lane multiple so the
    # kernel's output store is an unmasked vst; sliced back to T afterwards.
    Tp = _round_up(max(T, 1), 128)

    # --- layout glue (plain JAX, raw image bytes only; no im2col in HBM) ----
    x = jnp.transpose(image_nchw, (0, 2, 3, 1)).astype(jnp.float32)   # NHWC
    x_pad = jnp.pad(x, ((0, N_pad - N), (1, 1), (1, 1), (0, 0)))

    # (Cout, Cin, 3, 3) -> (kh, kw, Cin, Cout) -> (9*Cin, Cout); row ordering
    # (tap-major, channel-minor) matches the in-kernel im2col concat order.
    wc = jnp.transpose(conv_w, (2, 3, 1, 0)).reshape(K9, Cout).astype(jnp.float32)
    bc = conv_b.reshape(1, Cout).astype(jnp.float32)
    wf = jnp.zeros((Cout, Tp), jnp.float32).at[:, :T].set(jnp.transpose(fc_w))
    bf = jnp.zeros((1, Tp), jnp.float32).at[0, :T].set(fc_b)

    kernel = _make_fused_kernel(Nb, H, W, Cin, Cout, Tp, matmul_dtype)

    x_block = (Nb, H + 2, W + 2, Cin)
    out_block = (Nb, Tp)

    # Size the VMEM limit from the actual (double-buffered) block footprints
    # plus headroom for in-kernel intermediates; conservative for v7x (64 MiB).
    vmem_bytes = (
        2 * (_padded_tile_bytes(x_block) + _padded_tile_bytes(out_block))
        + 2 * (_padded_tile_bytes((K9, Cout)) + _padded_tile_bytes((1, Cout))
               + _padded_tile_bytes((Cout, Tp)) + _padded_tile_bytes((1, Tp)))
        + _padded_tile_bytes((Nb * HW, K9)) + _padded_tile_bytes((Nb * HW, Cout))
        + 8 * 1024 * 1024
    )
    vmem_bytes = int(min(vmem_bytes, 48 * 1024 * 1024))

    cost = pl.CostEstimate(
        flops=2 * N_pad * HW * K9 * Cout + 2 * N_pad * Cout * Tp,
        transcendentals=0,
        bytes_accessed=4 * (x_pad.size + wc.size + bc.size + wf.size + bf.size
                            + N_pad * Tp),
    )

    out = pl.pallas_call(
        kernel,
        out_shape=jax.ShapeDtypeStruct((N_pad, Tp), jnp.float32),
        grid=(G,),
        in_specs=[
            pl.BlockSpec(x_block, lambda g: (g, 0, 0, 0)),
            # Weight inputs have constant index maps (re-used every step);
            # at real head sizes use pipeline_mode=pl.Buffered(1) or a scratch
            # copy to drop their second pipeline buffer.
            pl.BlockSpec((K9, Cout), lambda g: (0, 0)),
            pl.BlockSpec((1, Cout), lambda g: (0, 0)),
            pl.BlockSpec((Cout, Tp), lambda g: (0, 0)),
            pl.BlockSpec((1, Tp), lambda g: (0, 0)),
        ],
        out_specs=pl.BlockSpec(out_block, lambda g: (g, 0)),
        compiler_params=pltpu.CompilerParams(
            dimension_semantics=("parallel",),      # megacore batch split (v7x)
            vmem_limit_bytes=vmem_bytes,
        ),
        cost_estimate=cost,
    )(x_pad, wc, bc, wf, bf)

    return out[:N, :T]


def reference_forward(image_nchw, params):
    """Pure-JAX reference for validation."""
    conv_w, conv_b = params["conv_w"], params["conv_b"]
    fc_w, fc_b = params["fc_w"], params["fc_b"]
    y = jax.lax.conv_general_dilated(
        image_nchw, conv_w, window_strides=(1, 1), padding="SAME",
        dimension_numbers=("NCHW", "OIHW", "NCHW"))
    y = jnp.maximum(y + conv_b[None, :, None, None], 0.0)
    feat = jnp.mean(y, axis=(2, 3))                     # (N, Cout)
    return feat @ fc_w.T + fc_b[None, :]


if __name__ == "__main__":
    # cfg analogue: {'model_type': 'ResNet', 'target_size': 4}, n_features = 32
    N, Cin, H, W = 2, 3, 16, 16
    n_features, target_size = 32, 4

    key = jax.random.PRNGKey(0)
    k_img, k_cw, k_cb, k_fw, k_fb = jax.random.split(key, 5)

    image = jax.random.normal(k_img, (N, Cin, H, W), dtype=jnp.float32)
    params = {
        "conv_w": jax.random.normal(k_cw, (n_features, Cin, 3, 3),
                                    dtype=jnp.float32) * 0.1,
        "conv_b": jax.random.normal(k_cb, (n_features,), dtype=jnp.float32) * 0.1,
        "fc_w": jax.random.normal(k_fw, (target_size, n_features),
                                  dtype=jnp.float32) * 0.1,
        "fc_b": jax.random.normal(k_fb, (target_size,), dtype=jnp.float32) * 0.1,
    }

    out = model_forward(image, params)
    out = jax.block_until_ready(out)

    ref = jax.block_until_ready(reference_forward(image, params))
    assert out.shape == (N, target_size), out.shape
    assert jnp.allclose(out, ref, rtol=1e-3, atol=1e-3), \
        f"max diff {jnp.max(jnp.abs(out - ref))}"

    print("KERNEL_OK")
</pallas_src>

<mosaic_0001>
module attributes {stable_mosaic.version = 11 : i64} {
  func.func @kernel(%arg0: i32, %arg1: memref<2x18x18x3xf32, #tpu.memory_space<vmem>>, %arg2: memref<27x32xf32, #tpu.memory_space<vmem>>, %arg3: memref<1x32xf32, #tpu.memory_space<vmem>>, %arg4: memref<32x128xf32, #tpu.memory_space<vmem>>, %arg5: memref<1x128xf32, #tpu.memory_space<vmem>>, %arg6: memref<2x128xf32, #tpu.memory_space<vmem>>) attributes {dimension_semantics = [#tpu.dimension_semantics<parallel>], iteration_bounds = array<i64: 1>, scalar_prefetch = 0 : i64, scratch_operands = 0 : i64, tpu.core_type = #tpu.core_type<tc>, window_params = [{transform_indices = @transform_0, window_bounds = array<i64: 2, 18, 18, 3>}, {pipeline_mode = #tpu.pipeline_mode<synchronous>, transform_indices = @transform_1, window_bounds = array<i64: 27, 32>}, {pipeline_mode = #tpu.pipeline_mode<synchronous>, transform_indices = @transform_2, window_bounds = array<i64: 1, 32>}, {pipeline_mode = #tpu.pipeline_mode<synchronous>, transform_indices = @transform_3, window_bounds = array<i64: 32, 128>}, {pipeline_mode = #tpu.pipeline_mode<synchronous>, transform_indices = @transform_4, window_bounds = array<i64: 1, 128>}, {transform_indices = @transform_5, window_bounds = array<i64: 2, 128>}]} {
    %c0 = arith.constant 0 : index
    %c0_0 = arith.constant 0 : index
    %c0_1 = arith.constant 0 : index
    %c0_2 = arith.constant 0 : index
    %0 = vector.load %arg1[%c0, %c0_0, %c0_1, %c0_2] : memref<2x18x18x3xf32, #tpu.memory_space<vmem>>, vector<2x18x18x3xf32>
    %1 = vector.extract_strided_slice %0 {offsets = [0, 0, 0, 0], sizes = [2, 16, 16, 3], strides = [1, 1, 1, 1]} : vector<2x18x18x3xf32> to vector<2x16x16x3xf32>
    %2 = vector.extract_strided_slice %0 {offsets = [0, 0, 1, 0], sizes = [2, 16, 16, 3], strides = [1, 1, 1, 1]} : vector<2x18x18x3xf32> to vector<2x16x16x3xf32>
    %3 = vector.extract_strided_slice %0 {offsets = [0, 0, 2, 0], sizes = [2, 16, 16, 3], strides = [1, 1, 1, 1]} : vector<2x18x18x3xf32> to vector<2x16x16x3xf32>
    %4 = vector.extract_strided_slice %0 {offsets = [0, 1, 0, 0], sizes = [2, 16, 16, 3], strides = [1, 1, 1, 1]} : vector<2x18x18x3xf32> to vector<2x16x16x3xf32>
    %5 = vector.extract_strided_slice %0 {offsets = [0, 1, 1, 0], sizes = [2, 16, 16, 3], strides = [1, 1, 1, 1]} : vector<2x18x18x3xf32> to vector<2x16x16x3xf32>
    %6 = vector.extract_strided_slice %0 {offsets = [0, 1, 2, 0], sizes = [2, 16, 16, 3], strides = [1, 1, 1, 1]} : vector<2x18x18x3xf32> to vector<2x16x16x3xf32>
    %7 = vector.extract_strided_slice %0 {offsets = [0, 2, 0, 0], sizes = [2, 16, 16, 3], strides = [1, 1, 1, 1]} : vector<2x18x18x3xf32> to vector<2x16x16x3xf32>
    %8 = vector.extract_strided_slice %0 {offsets = [0, 2, 1, 0], sizes = [2, 16, 16, 3], strides = [1, 1, 1, 1]} : vector<2x18x18x3xf32> to vector<2x16x16x3xf32>
    %9 = vector.extract_strided_slice %0 {offsets = [0, 2, 2, 0], sizes = [2, 16, 16, 3], strides = [1, 1, 1, 1]} : vector<2x18x18x3xf32> to vector<2x16x16x3xf32>
    %10 = tpu.concatenate %1, %2, %3, %4, %5, %6, %7, %8, %9 in 3 : vector<2x16x16x3xf32>, vector<2x16x16x3xf32>, vector<2x16x16x3xf32>, vector<2x16x16x3xf32>, vector<2x16x16x3xf32>, vector<2x16x16x3xf32>, vector<2x16x16x3xf32>, vector<2x16x16x3xf32>, vector<2x16x16x3xf32> -> vector<2x16x16x27xf32>
    %11 = vector.shape_cast %10 : vector<2x16x16x27xf32> to vector<512x27xf32>
    %c0_3 = arith.constant 0 : index
    %c0_4 = arith.constant 0 : index
    %12 = vector.load %arg2[%c0_3, %c0_4] : memref<27x32xf32, #tpu.memory_space<vmem>>, vector<27x32xf32>
    %cst = arith.constant dense<0.000000e+00> : vector<512x32xf32>
    %13 = tpu.matmul %11, %12, %cst {dimension_numbers = #tpu.dot_dimension_numbers<[1], [0], [0], [1], [0, 0, 1, 1], [], []>} : vector<512x27xf32>, vector<27x32xf32>, vector<512x32xf32> -> vector<512x32xf32>
    %c0_5 = arith.constant 0 : index
    %c0_6 = arith.constant 0 : index
    %14 = vector.load %arg3[%c0_5, %c0_6] : memref<1x32xf32, #tpu.memory_space<vmem>>, vector<1x32xf32>
    %15 = vector.broadcast %14 : vector<1x32xf32> to vector<512x32xf32>
    %16 = arith.addf %13, %15 : vector<512x32xf32>
    %cst_7 = arith.constant 0.000000e+00 : f32
    %17 = vector.broadcast %cst_7 : f32 to vector<512x32xf32>
    %18 = arith.maximumf %16, %17 : vector<512x32xf32>
    %19 = vector.shape_cast %18 : vector<512x32xf32> to vector<2x256x32xf32>
    %cst_8 = arith.constant dense<0.000000e+00> : vector<2x32xf32>
    %20 = vector.multi_reduction <add>, %19, %cst_8 [1] : vector<2x256x32xf32> to vector<2x32xf32>
    %cst_9 = arith.constant 3.906250e-03 : f32
    %21 = vector.broadcast %cst_9 : f32 to vector<2x32xf32>
    %22 = arith.mulf %20, %21 : vector<2x32xf32>
    %c0_10 = arith.constant 0 : index
    %c0_11 = arith.constant 0 : index
    %23 = vector.load %arg4[%c0_10, %c0_11] : memref<32x128xf32, #tpu.memory_space<vmem>>, vector<32x128xf32>
    %cst_12 = arith.constant dense<0.000000e+00> : vector<2x128xf32>
    %24 = tpu.matmul %22, %23, %cst_12 {dimension_numbers = #tpu.dot_dimension_numbers<[1], [0], [0], [1], [0, 0, 1, 1], [], []>} : vector<2x32xf32>, vector<32x128xf32>, vector<2x128xf32> -> vector<2x128xf32>
    %c0_13 = arith.constant 0 : index
    %c0_14 = arith.constant 0 : index
    %25 = vector.load %arg5[%c0_13, %c0_14] : memref<1x128xf32, #tpu.memory_space<vmem>>, vector<1x128xf32>
    %26 = vector.broadcast %25 : vector<1x128xf32> to vector<2x128xf32>
    %27 = arith.addf %24, %26 : vector<2x128xf32>
    %c0_15 = arith.constant 0 : index
    %c0_16 = arith.constant 0 : index
    %28 = vector.load %arg6[%c0_15, %c0_16] : memref<2x128xf32, #tpu.memory_space<vmem>>, vector<2x128xf32>
    tpu.vector_store %arg6[%c0_15, %c0_16], %27 {strides = array<i32>} : memref<2x128xf32, #tpu.memory_space<vmem>>, vector<2x128xf32>,
    return
  }
  func.func @transform_0(%arg0: i32) -> (i32, i32, i32, i32) {
    %c0_i32 = arith.constant 0 : i32
    %c0_i32_0 = arith.constant 0 : i32
    %c0_i32_1 = arith.constant 0 : i32
    %c0_i32_2 = arith.constant 0 : i32
    return %arg0, %c0_i32, %c0_i32_0, %c0_i32_1 : i32, i32, i32, i32
  }
  func.func @transform_1(%arg0: i32) -> (i32, i32) {
    %c0_i32 = arith.constant 0 : i32
    %c0_i32_0 = arith.constant 0 : i32
    %c0_i32_1 = arith.constant 0 : i32
    return %c0_i32, %c0_i32_0 : i32, i32
  }
  func.func @transform_2(%arg0: i32) -> (i32, i32) {
    %c0_i32 = arith.constant 0 : i32
    %c0_i32_0 = arith.constant 0 : i32
    %c0_i32_1 = arith.constant 0 : i32
    return %c0_i32, %c0_i32_0 : i32, i32
  }
  func.func @transform_3(%arg0: i32) -> (i32, i32) {
    %c0_i32 = arith.constant 0 : i32
    %c0_i32_0 = arith.constant 0 : i32
    %c0_i32_1 = arith.constant 0 : i32
    return %c0_i32, %c0_i32_0 : i32, i32
  }
  func.func @transform_4(%arg0: i32) -> (i32, i32) {
    %c0_i32 = arith.constant 0 : i32
    %c0_i32_0 = arith.constant 0 : i32
    %c0_i32_1 = arith.constant 0 : i32
    return %c0_i32, %c0_i32_0 : i32, i32
  }
  func.func @transform_5(%arg0: i32) -> (i32, i32) {
    %c0_i32 = arith.constant 0 : i32
    %c0_i32_0 = arith.constant 0 : i32
    return %arg0, %c0_i32 : i32, i32
  }
}

</mosaic_0001>

<llo_original>
// kernel: tpu_custom_call.1
$region0: #{tpu_custom_call.1}
  #allocation0 [shape = 'u32[]', space=smem, size = 0x4, offset = 0x4, fixed_abs, tag = 'smem constant byte address 0x4 - core index']
  #allocation1 [shape = 'u32[144,128]{1,0:T(1,128)}', space=vmem, size = 0x12000, scoped, tag = 'internal scratch']
  %s0 = inlined_call_operand.vmem [shape: f32[2,18,18,3], index: 0, kind: input, shape index: {}]
  %s1 = inlined_call_operand.vmem [shape: f32[27,32], index: 1, kind: input, shape index: {}]
  %s2 = inlined_call_operand.vmem [shape: f32[1,32], index: 2, kind: input, shape index: {}]
  %s3 = inlined_call_operand.vmem [shape: f32[32,128], index: 3, kind: input, shape index: {}]
  %s4 = inlined_call_operand.vmem [shape: f32[1,128], index: 4, kind: input, shape index: {}]
  %s5 = inlined_call_operand.hbm [shape: f32[2,128], index: 5, kind: output, shape index: {}]
  %s6 = sld [smem:[#allocation0]]
  $region30: #{tpu_custom_call.1} parent=0
    _
  %s8 = ssub.s32 1, %s6
  %s9 = scalar_select 0, %s8, %s6
  $region1: #{tpu_custom_call.1} parent=0
    #allocation2 [shape = 'u8[1024]{0}', space=vmem, size = 0x400, scoped, tag = 'output window, operand 0, single buffered']
    #allocation3 [shape = 's32[1]{0}', space=sflag, size = 0x4, scoped, tag = 'scoped memory for tpu_custom_call.1']
    %10 = vsyncpa [#allocation3], 0
    // Predicated region
    $region2: #{tpu_custom_call.1} parent=1 // pred_check
      _
    $region3: #{tpu_custom_call.1} parent=1 // pred_check_branch
      %12 = sbr.rel (0) target = $region5
    $region4: #{tpu_custom_call.1} parent=1 // pred_region
      _
    $region5: #{tpu_custom_call.1} parent=1 // pred_fallthru
      _
    // Predicated region
    $region6: #{tpu_custom_call.1} parent=1 // pred_check
      _
    $region7: #{tpu_custom_call.1} parent=1 // pred_check_branch
      %14 = sbr.rel (0) target = $region9
    $region8: #{tpu_custom_call.1} parent=1 // pred_region
      _
    $region9: #{tpu_custom_call.1} parent=1 // pred_fallthru
      _
    // Predicated region
    $region10: #{tpu_custom_call.1} parent=1 // pred_check
      _
    $region11: #{tpu_custom_call.1} parent=1 // pred_check_branch
      %16 = sbr.rel (0) target = $region13
    $region12: #{tpu_custom_call.1} parent=1 // pred_region
      _
    $region13: #{tpu_custom_call.1} parent=1 // pred_fallthru
      _
    // Predicated region
    $region14: #{tpu_custom_call.1} parent=1 // pred_check
      _
    $region15: #{tpu_custom_call.1} parent=1 // pred_check_branch
      %18 = sbr.rel (0) target = $region17
    $region16: #{tpu_custom_call.1} parent=1 // pred_region
      _
    $region17: #{tpu_custom_call.1} parent=1 // pred_fallthru
      _
    // Predicated region
    $region18: #{tpu_custom_call.1} parent=1 // pred_check
      _
    $region19: #{tpu_custom_call.1} parent=1 // pred_check_branch
      %20 = sbr.rel (0) target = $region21
    $region20: #{tpu_custom_call.1} parent=1 // pred_region
      _
    $region21: #{tpu_custom_call.1} parent=1 // pred_fallthru
      _
    %v21 = vld [vmem:[%s0] sm:$0xff]
    %v22 = vld [vmem:[%s0 + $0x8] sm:$0xff]
    %v23 = vld [vmem:[%s0 + $0x10] sm:$0x3]
    %v24 = vld [vmem:[%s0 + $0x18] sm:$0xff]
    %v25 = vld [vmem:[%s0 + $0x20] sm:$0xff]
    %v26 = vld [vmem:[%s0 + $0x28] sm:$0x3]
    %v27 = vld [vmem:[%s0 + $0x30] sm:$0xff]
    %v28 = vld [vmem:[%s0 + $0x38] sm:$0xff]
    %v29 = vld [vmem:[%s0 + $0x40] sm:$0x3]
    %v30 = vld [vmem:[%s0 + $0x48] sm:$0xff]
    %v31 = vld [vmem:[%s0 + $0x50] sm:$0xff]
    %v32 = vld [vmem:[%s0 + $0x58] sm:$0x3]
    %v33 = vld [vmem:[%s0 + $0x60] sm:$0xff]
    %v34 = vld [vmem:[%s0 + $0x68] sm:$0xff]
    %v35 = vld [vmem:[%s0 + $0x70] sm:$0x3]
    %v36 = vld [vmem:[%s0 + $0x78] sm:$0xff]
    %v37 = vld [vmem:[%s0 + $0x80] sm:$0xff]
    %v38 = vld [vmem:[%s0 + $0x88] sm:$0x3]
    %v39 = vld [vmem:[%s0 + $0x90] sm:$0xff]
    %v40 = vld [vmem:[%s0 + $0x98] sm:$0xff]
    %v41 = vld [vmem:[%s0 + $0xa0] sm:$0x3]
    %v42 = vld [vmem:[%s0 + $0xa8] sm:$0xff]
    %v43 = vld [vmem:[%s0 + $0xb0] sm:$0xff]
    %v44 = vld [vmem:[%s0 + $0xb8] sm:$0x3]
    %v45 = vld [vmem:[%s0 + $0xc0] sm:$0xff]
    %v46 = vld [vmem:[%s0 + $0xc8] sm:$0xff]
    %v47 = vld [vmem:[%s0 + $0xd0] sm:$0x3]
    %v48 = vld [vmem:[%s0 + $0xd8] sm:$0xff]
    %v49 = vld [vmem:[%s0 + $0xe0] sm:$0xff]
    %v50 = vld [vmem:[%s0 + $0xe8] sm:$0x3]
    %v51 = vld [vmem:[%s0 + $0xf0] sm:$0xff]
    %v52 = vld [vmem:[%s0 + $0xf8] sm:$0xff]
    %v53 = vld [vmem:[%s0 + $0x100] sm:$0x3]
    %v54 = vld [vmem:[%s0 + $0x108] sm:$0xff]
    %v55 = vld [vmem:[%s0 + $0x110] sm:$0xff]
    %v56 = vld [vmem:[%s0 + $0x118] sm:$0x3]
    %v57 = vld [vmem:[%s0 + $0x120] sm:$0xff]
    %v58 = vld [vmem:[%s0 + $0x128] sm:$0xff]
    %v59 = vld [vmem:[%s0 + $0x130] sm:$0x3]
    %v60 = vld [vmem:[%s0 + $0x138] sm:$0xff]
    %v61 = vld [vmem:[%s0 + $0x140] sm:$0xff]
    %v62 = vld [vmem:[%s0 + $0x148] sm:$0x3]
    %v63 = vld [vmem:[%s0 + $0x150] sm:$0xff]
    %v64 = vld [vmem:[%s0 + $0x158] sm:$0xff]
    %v65 = vld [vmem:[%s0 + $0x160] sm:$0x3]
    %v66 = vld [vmem:[%s0 + $0x168] sm:$0xff]
    %v67 = vld [vmem:[%s0 + $0x170] sm:$0xff]
    %v68 = vld [vmem:[%s0 + $0x178] sm:$0x3]
    %v69 = vld [vmem:[%s0 + $0x180] sm:$0xff]
    %v70 = vld [vmem:[%s0 + $0x188] sm:$0xff]
    %v71 = vld [vmem:[%s0 + $0x190] sm:$0x3]
    %v72 = vld [vmem:[%s0 + $0x198] sm:$0xff]
    %v73 = vld [vmem:[%s0 + $0x1a0] sm:$0xff]
    %v74 = vld [vmem:[%s0 + $0x1a8] sm:$0x3]
    %v75 = vld [vmem:[%s0 + $0x1b0] sm:$0xff]
    %v76 = vld [vmem:[%s0 + $0x1b8] sm:$0xff]
    %v77 = vld [vmem:[%s0 + $0x1c0] sm:$0x3]
    %v78 = vld [vmem:[%s0 + $0x1c8] sm:$0xff]
    %v79 = vld [vmem:[%s0 + $0x1d0] sm:$0xff]
    %v80 = vld [vmem:[%s0 + $0x1d8] sm:$0x3]
    %v81 = vld [vmem:[%s0 + $0x1e0] sm:$0xff]
    %v82 = vld [vmem:[%s0 + $0x1e8] sm:$0xff]
    %v83 = vld [vmem:[%s0 + $0x1f0] sm:$0x3]
    %v84 = vld [vmem:[%s0 + $0x1f8] sm:$0xff]
    %v85 = vld [vmem:[%s0 + $0x200] sm:$0xff]
    %v86 = vld [vmem:[%s0 + $0x208] sm:$0x3]
    %v87 = vld [vmem:[%s0 + $0x210] sm:$0xff]
    %v88 = vld [vmem:[%s0 + $0x218] sm:$0xff]
    %v89 = vld [vmem:[%s0 + $0x220] sm:$0x3]
    %v90 = vld [vmem:[%s0 + $0x228] sm:$0xff]
    %v91 = vld [vmem:[%s0 + $0x230] sm:$0xff]
    %v92 = vld [vmem:[%s0 + $0x238] sm:$0x3]
    %v93 = vld [vmem:[%s0 + $0x240] sm:$0xff]
    %v94 = vld [vmem:[%s0 + $0x248] sm:$0xff]
    %v95 = vld [vmem:[%s0 + $0x250] sm:$0x3]
    %v96 = vld [vmem:[%s0 + $0x258] sm:$0xff]
    %v97 = vld [vmem:[%s0 + $0x260] sm:$0xff]
    %v98 = vld [vmem:[%s0 + $0x268] sm:$0x3]
    %v99 = vld [vmem:[%s0 + $0x270] sm:$0xff]
    %v100 = vld [vmem:[%s0 + $0x278] sm:$0xff]
    %v101 = vld [vmem:[%s0 + $0x280] sm:$0x3]
    %v102 = vld [vmem:[%s0 + $0x288] sm:$0xff]
    %v103 = vld [vmem:[%s0 + $0x290] sm:$0xff]
    %v104 = vld [vmem:[%s0 + $0x298] sm:$0x3]
    %v105 = vld [vmem:[%s0 + $0x2a0] sm:$0xff]
    %v106 = vld [vmem:[%s0 + $0x2a8] sm:$0xff]
    %v107 = vld [vmem:[%s0 + $0x2b0] sm:$0x3]
    %v108 = vld [vmem:[%s0 + $0x2b8] sm:$0xff]
    %v109 = vld [vmem:[%s0 + $0x2c0] sm:$0xff]
    %v110 = vld [vmem:[%s0 + $0x2c8] sm:$0x3]
    %v111 = vld [vmem:[%s0 + $0x2d0] sm:$0xff]
    %v112 = vld [vmem:[%s0 + $0x2d8] sm:$0xff]
    %v113 = vld [vmem:[%s0 + $0x2e0] sm:$0x3]
    %v114 = vld [vmem:[%s0 + $0x2e8] sm:$0xff]
    %v115 = vld [vmem:[%s0 + $0x2f0] sm:$0xff]
    %v116 = vld [vmem:[%s0 + $0x2f8] sm:$0x3]
    %v117 = vld [vmem:[%s0 + $0x300] sm:$0xff]
    %v118 = vld [vmem:[%s0 + $0x308] sm:$0xff]
    %v119 = vld [vmem:[%s0 + $0x310] sm:$0x3]
    %v120 = vld [vmem:[%s0 + $0x318] sm:$0xff]
    %v121 = vld [vmem:[%s0 + $0x320] sm:$0xff]
    %v122 = vld [vmem:[%s0 + $0x328] sm:$0x3]
    %v123 = vld [vmem:[%s0 + $0x330] sm:$0xff]
    %v124 = vld [vmem:[%s0 + $0x338] sm:$0xff]
    %v125 = vld [vmem:[%s0 + $0x340] sm:$0x3]
    %v126 = vld [vmem:[%s0 + $0x348] sm:$0xff]
    %v127 = vld [vmem:[%s0 + $0x350] sm:$0xff]
    %v128 = vld [vmem:[%s0 + $0x358] sm:$0x3]
    %vm225 = vcmask 1046528
    %v226 = vrot.slane %v21, 1
    %v227 = vrot.slane %v22, 1
    %v228 = vsel %vm225, %v226, %v227
    %v229 = vrot.slane %v23, 1
    %v230 = vsel %vm225, %v227, %v229
    %v231 = vrot.slane %v24, 1
    %v232 = vrot.slane %v25, 1
    %v233 = vsel %vm225, %v231, %v232
    %v234 = vrot.slane %v26, 1
    %v235 = vsel %vm225, %v232, %v234
    %v236 = vrot.slane %v27, 1
    %v237 = vrot.slane %v28, 1
    %v238 = vsel %vm225, %v236, %v237
    %v239 = vrot.slane %v29, 1
    %v240 = vsel %vm225, %v237, %v239
    %v241 = vrot.slane %v30, 1
    %v242 = vrot.slane %v31, 1
    %v243 = vsel %vm225, %v241, %v242
    %v244 = vrot.slane %v32, 1
    %v245 = vsel %vm225, %v242, %v244
    %v246 = vrot.slane %v33, 1
    %v247 = vrot.slane %v34, 1
    %v248 = vsel %vm225, %v246, %v247
    %v249 = vrot.slane %v35, 1
    %v250 = vsel %vm225, %v247, %v249
    %v251 = vrot.slane %v36, 1
    %v252 = vrot.slane %v37, 1
    %v253 = vsel %vm225, %v251, %v252
    %v254 = vrot.slane %v38, 1
    %v255 = vsel %vm225, %v252, %v254
    %v256 = vrot.slane %v39, 1
    %v257 = vrot.slane %v40, 1
    %v258 = vsel %vm225, %v256, %v257
    %v259 = vrot.slane %v41, 1
    %v260 = vsel %vm225, %v257, %v259
    %v261 = vrot.slane %v42, 1
    %v262 = vrot.slane %v43, 1
    %v263 = vsel %vm225, %v261, %v262
    %v264 = vrot.slane %v44, 1
    %v265 = vsel %vm225, %v262, %v264
    %v266 = vrot.slane %v45, 1
    %v267 = vrot.slane %v46, 1
    %v268 = vsel %vm225, %v266, %v267
    %v269 = vrot.slane %v47, 1
    %v270 = vsel %vm225, %v267, %v269
    %v271 = vrot.slane %v48, 1
    %v272 = vrot.slane %v49, 1
    %v273 = vsel %vm225, %v271, %v272
    %v274 = vrot.slane %v50, 1
    %v275 = vsel %vm225, %v272, %v274
    %v276 = vrot.slane %v51, 1
    %v277 = vrot.slane %v52, 1
    %v278 = vsel %vm225, %v276, %v277
    %v279 = vrot.slane %v53, 1
    %v280 = vsel %vm225, %v277, %v279
    %v281 = vrot.slane %v54, 1
    %v282 = vrot.slane %v55, 1
    %v283 = vsel %vm225, %v281, %v282
    %v284 = vrot.slane %v56, 1
    %v285 = vsel %vm225, %v282, %v284
    %v286 = vrot.slane %v57, 1
    %v287 = vrot.slane %v58, 1
    %v288 = vsel %vm225, %v286, %v287
    %v289 = vrot.slane %v59, 1
    %v290 = vsel %vm225, %v287, %v289
    %v291 = vrot.slane %v60, 1
    %v292 = vrot.slane %v61, 1
    %v293 = vsel %vm225, %v291, %v292
    %v294 = vrot.slane %v62, 1
    %v295 = vsel %vm225, %v292, %v294
    %v296 = vrot.slane %v63, 1
    %v297 = vrot.slane %v64, 1
    %v298 = vsel %vm225, %v296, %v297
    %v299 = vrot.slane %v65, 1
    %v300 = vsel %vm225, %v297, %v299
    %v301 = vrot.slane %v66, 1
    %v302 = vrot.slane %v67, 1
    %v303 = vsel %vm225, %v301, %v302
    %v304 = vrot.slane %v68, 1
    %v305 = vsel %vm225, %v302, %v304
    %v306 = vrot.slane %v75, 1
    %v307 = vrot.slane %v76, 1
    %v308 = vsel %vm225, %v306, %v307
    %v309 = vrot.slane %v77, 1
    %v310 = vsel %vm225, %v307, %v309
    %v311 = vrot.slane %v78, 1
    %v312 = vrot.slane %v79, 1
    %v313 = vsel %vm225, %v311, %v312
    %v314 = vrot.slane %v80, 1
    %v315 = vsel %vm225, %v312, %v314
    %v316 = vrot.slane %v81, 1
    %v317 = vrot.slane %v82, 1
    %v318 = vsel %vm225, %v316, %v317
    %v319 = vrot.slane %v83, 1
    %v320 = vsel %vm225, %v317, %v319
    %v321 = vrot.slane %v84, 1
    %v322 = vrot.slane %v85, 1
    %v323 = vsel %vm225, %v321, %v322
    %v324 = vrot.slane %v86, 1
    %v325 = vsel %vm225, %v322, %v324
    %v326 = vrot.slane %v87, 1
    %v327 = vrot.slane %v88, 1
    %v328 = vsel %vm225, %v326, %v327
    %v329 = vrot.slane %v89, 1
    %v330 = vsel %vm225, %v327, %v329
    %v331 = vrot.slane %v90, 1
    %v332 = vrot.slane %v91, 1
    %v333 = vsel %vm225, %v331, %v332
    %v334 = vrot.slane %v92, 1
    %v335 = vsel %vm225, %v332, %v334
    %v336 = vrot.slane %v93, 1
    %v337 = vrot.slane %v94, 1
    %v338 = vsel %vm225, %v336, %v337
    %v339 = vrot.slane %v95, 1
    %v340 = vsel %vm225, %v337, %v339
    %v341 = vrot.slane %v96, 1
    %v342 = vrot.slane %v97, 1
    %v343 = vsel %vm225, %v341, %v342
    %v344 = vrot.slane %v98, 1
    %v345 = vsel %vm225, %v342, %v344
    %v346 = vrot.slane %v99, 1
    %v347 = vrot.slane %v100, 1
    %v348 = vsel %vm225, %v346, %v347
    %v349 = vrot.slane %v101, 1
    %v350 = vsel %vm225, %v347, %v349
    %v351 = vrot.slane %v102, 1
    %v352 = vrot.slane %v103, 1
    %v353 = vsel %vm225, %v351, %v352
    %v354 = vrot.slane %v104, 1
    %v355 = vsel %vm225, %v352, %v354
    %v356 = vrot.slane %v105, 1
    %v357 = vrot.slane %v106, 1
    %v358 = vsel %vm225, %v356, %v357
    %v359 = vrot.slane %v107, 1
    %v360 = vsel %vm225, %v357, %v359
    %v361 = vrot.slane %v108, 1
    %v362 = vrot.slane %v109, 1
    %v363 = vsel %vm225, %v361, %v362
    %v364 = vrot.slane %v110, 1
    %v365 = vsel %vm225, %v362, %v364
    %v366 = vrot.slane %v111, 1
    %v367 = vrot.slane %v112, 1
    %v368 = vsel %vm225, %v366, %v367
    %v369 = vrot.slane %v113, 1
    %v370 = vsel %vm225, %v367, %v369
    %v371 = vrot.slane %v114, 1
    %v372 = vrot.slane %v115, 1
    %v373 = vsel %vm225, %v371, %v372
    %v374 = vrot.slane %v116, 1
    %v375 = vsel %vm225, %v372, %v374
    %v376 = vrot.slane %v117, 1
    %v377 = vrot.slane %v118, 1
    %v378 = vsel %vm225, %v376, %v377
    %v379 = vrot.slane %v119, 1
    %v380 = vsel %vm225, %v377, %v379
    %v381 = vrot.slane %v120, 1
    %v382 = vrot.slane %v121, 1
    %v383 = vsel %vm225, %v381, %v382
    %v384 = vrot.slane %v122, 1
    %v385 = vsel %vm225, %v382, %v384
    %386 = vrot.lane.b32.xlu0 %v228, 3
    %v387 = vpop.permute.xlu0 %386
    %388 = vrot.lane.b32.xlu0 %v230, 3
    %v389 = vpop.permute.xlu0 %388
    %390 = vrot.lane.b32.xlu0 %v233, 3
    %v391 = vpop.permute.xlu0 %390
    %392 = vrot.lane.b32.xlu0 %v235, 3
    %v393 = vpop.permute.xlu0 %392
    %394 = vrot.lane.b32.xlu0 %v238, 3
    %v395 = vpop.permute.xlu0 %394
    %396 = vrot.lane.b32.xlu0 %v240, 3
    %v397 = vpop.permute.xlu0 %396
    %398 = vrot.lane.b32.xlu0 %v243, 3
    %v399 = vpop.permute.xlu0 %398
    %400 = vrot.lane.b32.xlu0 %v245, 3
    %v401 = vpop.permute.xlu0 %400
    %402 = vrot.lane.b32.xlu0 %v248, 3
    %v403 = vpop.permute.xlu0 %402
    %404 = vrot.lane.b32.xlu0 %v250, 3
    %v405 = vpop.permute.xlu0 %404
    %406 = vrot.lane.b32.xlu0 %v253, 3
    %v407 = vpop.permute.xlu0 %406
    %408 = vrot.lane.b32.xlu0 %v255, 3
    %v409 = vpop.permute.xlu0 %408
    %410 = vrot.lane.b32.xlu0 %v258, 3
    %v411 = vpop.permute.xlu0 %410
    %412 = vrot.lane.b32.xlu0 %v260, 3
    %v413 = vpop.permute.xlu0 %412
    %414 = vrot.lane.b32.xlu0 %v263, 3
    %v415 = vpop.permute.xlu0 %414
    %416 = vrot.lane.b32.xlu0 %v265, 3
    %v417 = vpop.permute.xlu0 %416
    %418 = vrot.lane.b32.xlu0 %v268, 3
    %v419 = vpop.permute.xlu0 %418
    %420 = vrot.lane.b32.xlu0 %v270, 3
    %v421 = vpop.permute.xlu0 %420
    %422 = vrot.lane.b32.xlu0 %v273, 3
    %v423 = vpop.permute.xlu0 %422
    %424 = vrot.lane.b32.xlu0 %v275, 3
    %v425 = vpop.permute.xlu0 %424
    %426 = vrot.lane.b32.xlu0 %v278, 3
    %v427 = vpop.permute.xlu0 %426
    %428 = vrot.lane.b32.xlu0 %v280, 3
    %v429 = vpop.permute.xlu0 %428
    %430 = vrot.lane.b32.xlu0 %v283, 3
    %v431 = vpop.permute.xlu0 %430
    %432 = vrot.lane.b32.xlu0 %v285, 3
    %v433 = vpop.permute.xlu0 %432
    %434 = vrot.lane.b32.xlu0 %v288, 3
    %v435 = vpop.permute.xlu0 %434
    %436 = vrot.lane.b32.xlu0 %v290, 3
    %v437 = vpop.permute.xlu0 %436
    %438 = vrot.lane.b32.xlu0 %v293, 3
    %v439 = vpop.permute.xlu0 %438
    %440 = vrot.lane.b32.xlu0 %v295, 3
    %v441 = vpop.permute.xlu0 %440
    %442 = vrot.lane.b32.xlu0 %v298, 3
    %v443 = vpop.permute.xlu0 %442
    %444 = vrot.lane.b32.xlu0 %v300, 3
    %v445 = vpop.permute.xlu0 %444
    %446 = vrot.lane.b32.xlu0 %v303, 3
    %v447 = vpop.permute.xlu0 %446
    %448 = vrot.lane.b32.xlu0 %v305, 3
    %v449 = vpop.permute.xlu0 %448
    %450 = vrot.lane.b32.xlu0 %v308, 3
    %v451 = vpop.permute.xlu0 %450
    %452 = vrot.lane.b32.xlu0 %v310, 3
    %v453 = vpop.permute.xlu0 %452
    %454 = vrot.lane.b32.xlu0 %v313, 3
    %v455 = vpop.permute.xlu0 %454
    %456 = vrot.lane.b32.xlu0 %v315, 3
    %v457 = vpop.permute.xlu0 %456
    %458 = vrot.lane.b32.xlu0 %v318, 3
    %v459 = vpop.permute.xlu0 %458
    %460 = vrot.lane.b32.xlu0 %v320, 3
    %v461 = vpop.permute.xlu0 %460
    %462 = vrot.lane.b32.xlu0 %v323, 3
    %v463 = vpop.permute.xlu0 %462
    %464 = vrot.lane.b32.xlu0 %v325, 3
    %v465 = vpop.permute.xlu0 %464
    %466 = vrot.lane.b32.xlu0 %v328, 3
    %v467 = vpop.permute.xlu0 %466
    %468 = vrot.lane.b32.xlu0 %v330, 3
    %v469 = vpop.permute.xlu0 %468
    %470 = vrot.lane.b32.xlu0 %v333, 3
    %v471 = vpop.permute.xlu0 %470
    %472 = vrot.lane.b32.xlu0 %v335, 3
    %v473 = vpop.permute.xlu0 %472
    %474 = vrot.lane.b32.xlu0 %v338, 3
    %v475 = vpop.permute.xlu0 %474
    %476 = vrot.lane.b32.xlu0 %v340, 3
    %v477 = vpop.permute.xlu0 %476
    %478 = vrot.lane.b32.xlu0 %v343, 3
    %v479 = vpop.permute.xlu0 %478
    %480 = vrot.lane.b32.xlu0 %v345, 3
    %v481 = vpop.permute.xlu0 %480
    %482 = vrot.lane.b32.xlu0 %v348, 3
    %v483 = vpop.permute.xlu0 %482
    %484 = vrot.lane.b32.xlu0 %v350, 3
    %v485 = vpop.permute.xlu0 %484
    %486 = vrot.lane.b32.xlu0 %v353, 3
    %v487 = vpop.permute.xlu0 %486
    %488 = vrot.lane.b32.xlu0 %v355, 3
    %v489 = vpop.permute.xlu0 %488
    %490 = vrot.lane.b32.xlu0 %v358, 3
    %v491 = vpop.permute.xlu0 %490
    %492 = vrot.lane.b32.xlu0 %v360, 3
    %v493 = vpop.permute.xlu0 %492
    %494 = vrot.lane.b32.xlu0 %v363, 3
    %v495 = vpop.permute.xlu0 %494
    %496 = vrot.lane.b32.xlu0 %v365, 3
    %v497 = vpop.permute.xlu0 %496
    %498 = vrot.lane.b32.xlu0 %v368, 3
    %v499 = vpop.permute.xlu0 %498
    %500 = vrot.lane.b32.xlu0 %v370, 3
    %v501 = vpop.permute.xlu0 %500
    %502 = vrot.lane.b32.xlu0 %v373, 3
    %v503 = vpop.permute.xlu0 %502
    %504 = vrot.lane.b32.xlu0 %v375, 3
    %v505 = vpop.permute.xlu0 %504
    %506 = vrot.lane.b32.xlu0 %v378, 3
    %v507 = vpop.permute.xlu0 %506
    %508 = vrot.lane.b32.xlu0 %v380, 3
    %v509 = vpop.permute.xlu0 %508
    %510 = vrot.lane.b32.xlu0 %v383, 3
    %v511 = vpop.permute.xlu0 %510
    %512 = vrot.lane.b32.xlu0 %v385, 3
    %v513 = vpop.permute.xlu0 %512
    %vm578 = vcmask 1045504
    %v579 = vrot.slane %v21, 2
    %v580 = vrot.slane %v22, 2
    %v581 = vsel %vm578, %v579, %v580
    %v582 = vrot.slane %v23, 2
    %v583 = vsel %vm578, %v580, %v582
    %v584 = vrot.slane %v24, 2
    %v585 = vrot.slane %v25, 2
    %v586 = vsel %vm578, %v584, %v585
    %v587 = vrot.slane %v26, 2
    %v588 = vsel %vm578, %v585, %v587
    %v589 = vrot.slane %v27, 2
    %v590 = vrot.slane %v28, 2
    %v591 = vsel %vm578, %v589, %v590
    %v592 = vrot.slane %v29, 2
    %v593 = vsel %vm578, %v590, %v592
    %v594 = vrot.slane %v30, 2
    %v595 = vrot.slane %v31, 2
    %v596 = vsel %vm578, %v594, %v595
    %v597 = vrot.slane %v32, 2
    %v598 = vsel %vm578, %v595, %v597
    %v599 = vrot.slane %v33, 2
    %v600 = vrot.slane %v34, 2
    %v601 = vsel %vm578, %v599, %v600
    %v602 = vrot.slane %v35, 2
    %v603 = vsel %vm578, %v600, %v602
    %v604 = vrot.slane %v36, 2
    %v605 = vrot.slane %v37, 2
    %v606 = vsel %vm578, %v604, %v605
    %v607 = vrot.slane %v38, 2
    %v608 = vsel %vm578, %v605, %v607
    %v609 = vrot.slane %v39, 2
    %v610 = vrot.slane %v40, 2
    %v611 = vsel %vm578, %v609, %v610
    %v612 = vrot.slane %v41, 2
    %v613 = vsel %vm578, %v610, %v612
    %v614 = vrot.slane %v42, 2
    %v615 = vrot.slane %v43, 2
    %v616 = vsel %vm578, %v614, %v615
    %v617 = vrot.slane %v44, 2
    %v618 = vsel %vm578, %v615, %v617
    %v619 = vrot.slane %v45, 2
    %v620 = vrot.slane %v46, 2
    %v621 = vsel %vm578, %v619, %v620
    %v622 = vrot.slane %v47, 2
    %v623 = vsel %vm578, %v620, %v622
    %v624 = vrot.slane %v48, 2
    %v625 = vrot.slane %v49, 2
    %v626 = vsel %vm578, %v624, %v625
    %v627 = vrot.slane %v50, 2
    %v628 = vsel %vm578, %v625, %v627
    %v629 = vrot.slane %v51, 2
    %v630 = vrot.slane %v52, 2
    %v631 = vsel %vm578, %v629, %v630
    %v632 = vrot.slane %v53, 2
    %v633 = vsel %vm578, %v630, %v632
    %v634 = vrot.slane %v54, 2
    %v635 = vrot.slane %v55, 2
    %v636 = vsel %vm578, %v634, %v635
    %v637 = vrot.slane %v56, 2
    %v638 = vsel %vm578, %v635, %v637
    %v639 = vrot.slane %v57, 2
    %v640 = vrot.slane %v58, 2
    %v641 = vsel %vm578, %v639, %v640
    %v642 = vrot.slane %v59, 2
    %v643 = vsel %vm578, %v640, %v642
    %v644 = vrot.slane %v60, 2
    %v645 = vrot.slane %v61, 2
    %v646 = vsel %vm578, %v644, %v645
    %v647 = vrot.slane %v62, 2
    %v648 = vsel %vm578, %v645, %v647
    %v649 = vrot.slane %v63, 2
    %v650 = vrot.slane %v64, 2
    %v651 = vsel %vm578, %v649, %v650
    %v652 = vrot.slane %v65, 2
    %v653 = vsel %vm578, %v650, %v652
    %v654 = vrot.slane %v66, 2
    %v655 = vrot.slane %v67, 2
    %v656 = vsel %vm578, %v654, %v655
    %v657 = vrot.slane %v68, 2
    %v658 = vsel %vm578, %v655, %v657
    %v659 = vrot.slane %v75, 2
    %v660 = vrot.slane %v76, 2
    %v661 = vsel %vm578, %v659, %v660
    %v662 = vrot.slane %v77, 2
    %v663 = vsel %vm578, %v660, %v662
    %v664 = vrot.slane %v78, 2
    %v665 = vrot.slane %v79, 2
    %v666 = vsel %vm578, %v664, %v665
    %v667 = vrot.slane %v80, 2
    %v668 = vsel %vm578, %v665, %v667
    %v669 = vrot.slane %v81, 2
    %v670 = vrot.slane %v82, 2
    %v671 = vsel %vm578, %v669, %v670
    %v672 = vrot.slane %v83, 2
    %v673 = vsel %vm578, %v670, %v672
    %v674 = vrot.slane %v84, 2
    %v675 = vrot.slane %v85, 2
    %v676 = vsel %vm578, %v674, %v675
    %v677 = vrot.slane %v86, 2
    %v678 = vsel %vm578, %v675, %v677
    %v679 = vrot.slane %v87, 2
    %v680 = vrot.slane %v88, 2
    %v681 = vsel %vm578, %v679, %v680
    %v682 = vrot.slane %v89, 2
    %v683 = vsel %vm578, %v680, %v682
    %v684 = vrot.slane %v90, 2
    %v685 = vrot.slane %v91, 2
    %v686 = vsel %vm578, %v684, %v685
    %v687 = vrot.slane %v92, 2
    %v688 = vsel %vm578, %v685, %v687
    %v689 = vrot.slane %v93, 2
    %v690 = vrot.slane %v94, 2
    %v691 = vsel %vm578, %v689, %v690
    %v692 = vrot.slane %v95, 2
    %v693 = vsel %vm578, %v690, %v692
    %v694 = vrot.slane %v96, 2
    %v695 = vrot.slane %v97, 2
    %v696 = vsel %vm578, %v694, %v695
    %v697 = vrot.slane %v98, 2
    %v698 = vsel %vm578, %v695, %v697
    %v699 = vrot.slane %v99, 2
    %v700 = vrot.slane %v100, 2
    %v701 = vsel %vm578, %v699, %v700
    %v702 = vrot.slane %v101, 2
    %v703 = vsel %vm578, %v700, %v702
    %v704 = vrot.slane %v102, 2
    %v705 = vrot.slane %v103, 2
    %v706 = vsel %vm578, %v704, %v705
    %v707 = vrot.slane %v104, 2
    %v708 = vsel %vm578, %v705, %v707
    %v709 = vrot.slane %v105, 2
    %v710 = vrot.slane %v106, 2
    %v711 = vsel %vm578, %v709, %v710
    %v712 = vrot.slane %v107, 2
    %v713 = vsel %vm578, %v710, %v712
    %v714 = vrot.slane %v108, 2
    %v715 = vrot.slane %v109, 2
    %v716 = vsel %vm578, %v714, %v715
    %v717 = vrot.slane %v110, 2
    %v718 = vsel %vm578, %v715, %v717
    %v719 = vrot.slane %v111, 2
    %v720 = vrot.slane %v112, 2
    %v721 = vsel %vm578, %v719, %v720
    %v722 = vrot.slane %v113, 2
    %v723 = vsel %vm578, %v720, %v722
    %v724 = vrot.slane %v114, 2
    %v725 = vrot.slane %v115, 2
    %v726 = vsel %vm578, %v724, %v725
    %v727 = vrot.slane %v116, 2
    %v728 = vsel %vm578, %v725, %v727
    %v729 = vrot.slane %v117, 2
    %v730 = vrot.slane %v118, 2
    %v731 = vsel %vm578, %v729, %v730
    %v732 = vrot.slane %v119, 2
    %v733 = vsel %vm578, %v730, %v732
    %v734 = vrot.slane %v120, 2
    %v735 = vrot.slane %v121, 2
    %v736 = vsel %vm578, %v734, %v735
    %v737 = vrot.slane %v122, 2
    %v738 = vsel %vm578, %v735, %v737
    %739 = vrot.lane.b32.xlu0 %v581, 6
    %v740 = vpop.permute.xlu0 %739
    %741 = vrot.lane.b32.xlu0 %v583, 6
    %v742 = vpop.permute.xlu0 %741
    %743 = vrot.lane.b32.xlu0 %v586, 6
    %v744 = vpop.permute.xlu0 %743
    %745 = vrot.lane.b32.xlu0 %v588, 6
    %v746 = vpop.permute.xlu0 %745
    %747 = vrot.lane.b32.xlu0 %v591, 6
    %v748 = vpop.permute.xlu0 %747
    %749 = vrot.lane.b32.xlu0 %v593, 6
    %v750 = vpop.permute.xlu0 %749
    %751 = vrot.lane.b32.xlu0 %v596, 6
    %v752 = vpop.permute.xlu0 %751
    %753 = vrot.lane.b32.xlu0 %v598, 6
    %v754 = vpop.permute.xlu0 %753
    %755 = vrot.lane.b32.xlu0 %v601, 6
    %v756 = vpop.permute.xlu0 %755
    %757 = vrot.lane.b32.xlu0 %v603, 6
    %v758 = vpop.permute.xlu0 %757
    %759 = vrot.lane.b32.xlu0 %v606, 6
    %v760 = vpop.permute.xlu0 %759
    %761 = vrot.lane.b32.xlu0 %v608, 6
    %v762 = vpop.permute.xlu0 %761
    %763 = vrot.lane.b32.xlu0 %v611, 6
    %v764 = vpop.permute.xlu0 %763
    %765 = vrot.lane.b32.xlu0 %v613, 6
    %v766 = vpop.permute.xlu0 %765
    %767 = vrot.lane.b32.xlu0 %v616, 6
    %v768 = vpop.permute.xlu0 %767
    %769 = vrot.lane.b32.xlu0 %v618, 6
    %v770 = vpop.permute.xlu0 %769
    %771 = vrot.lane.b32.xlu0 %v621, 6
    %v772 = vpop.permute.xlu0 %771
    %773 = vrot.lane.b32.xlu0 %v623, 6
    %v774 = vpop.permute.xlu0 %773
    %775 = vrot.lane.b32.xlu0 %v626, 6
    %v776 = vpop.permute.xlu0 %775
    %777 = vrot.lane.b32.xlu0 %v628, 6
    %v778 = vpop.permute.xlu0 %777
    %779 = vrot.lane.b32.xlu0 %v631, 6
    %v780 = vpop.permute.xlu0 %779
    %781 = vrot.lane.b32.xlu0 %v633, 6
    %v782 = vpop.permute.xlu0 %781
    %783 = vrot.lane.b32.xlu0 %v636, 6
    %v784 = vpop.permute.xlu0 %783
    %785 = vrot.lane.b32.xlu0 %v638, 6
    %v786 = vpop.permute.xlu0 %785
    %787 = vrot.lane.b32.xlu0 %v641, 6
    %v788 = vpop.permute.xlu0 %787
    %789 = vrot.lane.b32.xlu0 %v643, 6
    %v790 = vpop.permute.xlu0 %789
    %791 = vrot.lane.b32.xlu0 %v646, 6
    %v792 = vpop.permute.xlu0 %791
    %793 = vrot.lane.b32.xlu0 %v648, 6
    %v794 = vpop.permute.xlu0 %793
    %795 = vrot.lane.b32.xlu0 %v651, 6
    %v796 = vpop.permute.xlu0 %795
    %797 = vrot.lane.b32.xlu0 %v653, 6
    %v798 = vpop.permute.xlu0 %797
    %799 = vrot.lane.b32.xlu0 %v656, 6
    %v800 = vpop.permute.xlu0 %799
    %801 = vrot.lane.b32.xlu0 %v658, 6
    %v802 = vpop.permute.xlu0 %801
    %803 = vrot.lane.b32.xlu0 %v661, 6
    %v804 = vpop.permute.xlu0 %803
    %805 = vrot.lane.b32.xlu0 %v663, 6
    %v806 = vpop.permute.xlu0 %805
    %807 = vrot.lane.b32.xlu0 %v666, 6
    %v808 = vpop.permute.xlu0 %807
    %809 = vrot.lane.b32.xlu0 %v668, 6
    %v810 = vpop.permute.xlu0 %809
    %811 = vrot.lane.b32.xlu0 %v671, 6
    %v812 = vpop.permute.xlu0 %811
    %813 = vrot.lane.b32.xlu0 %v673, 6
    %v814 = vpop.permute.xlu0 %813
    %815 = vrot.lane.b32.xlu0 %v676, 6
    %v816 = vpop.permute.xlu0 %815
    %817 = vrot.lane.b32.xlu0 %v678, 6
    %v818 = vpop.permute.xlu0 %817
    %819 = vrot.lane.b32.xlu0 %v681, 6
    %v820 = vpop.permute.xlu0 %819
    %821 = vrot.lane.b32.xlu0 %v683, 6
    %v822 = vpop.permute.xlu0 %821
    %823 = vrot.lane.b32.xlu0 %v686, 6
    %v824 = vpop.permute.xlu0 %823
    %825 = vrot.lane.b32.xlu0 %v688, 6
    %v826 = vpop.permute.xlu0 %825
    %827 = vrot.lane.b32.xlu0 %v691, 6
    %v828 = vpop.permute.xlu0 %827
    %829 = vrot.lane.b32.xlu0 %v693, 6
    %v830 = vpop.permute.xlu0 %829
    %831 = vrot.lane.b32.xlu0 %v696, 6
    %v832 = vpop.permute.xlu0 %831
    %833 = vrot.lane.b32.xlu0 %v698, 6
    %v834 = vpop.permute.xlu0 %833
    %835 = vrot.lane.b32.xlu0 %v701, 6
    %v836 = vpop.permute.xlu0 %835
    %837 = vrot.lane.b32.xlu0 %v703, 6
    %v838 = vpop.permute.xlu0 %837
    %839 = vrot.lane.b32.xlu0 %v706, 6
    %v840 = vpop.permute.xlu0 %839
    %841 = vrot.lane.b32.xlu0 %v708, 6
    %v842 = vpop.permute.xlu0 %841
    %843 = vrot.lane.b32.xlu0 %v711, 6
    %v844 = vpop.permute.xlu0 %843
    %845 = vrot.lane.b32.xlu0 %v713, 6
    %v846 = vpop.permute.xlu0 %845
    %847 = vrot.lane.b32.xlu0 %v716, 6
    %v848 = vpop.permute.xlu0 %847
    %849 = vrot.lane.b32.xlu0 %v718, 6
    %v850 = vpop.permute.xlu0 %849
    %851 = vrot.lane.b32.xlu0 %v721, 6
    %v852 = vpop.permute.xlu0 %851
    %853 = vrot.lane.b32.xlu0 %v723, 6
    %v854 = vpop.permute.xlu0 %853
    %855 = vrot.lane.b32.xlu0 %v726, 6
    %v856 = vpop.permute.xlu0 %855
    %857 = vrot.lane.b32.xlu0 %v728, 6
    %v858 = vpop.permute.xlu0 %857
    %859 = vrot.lane.b32.xlu0 %v731, 6
    %v860 = vpop.permute.xlu0 %859
    %861 = vrot.lane.b32.xlu0 %v733, 6
    %v862 = vpop.permute.xlu0 %861
    %863 = vrot.lane.b32.xlu0 %v736, 6
    %v864 = vpop.permute.xlu0 %863
    %865 = vrot.lane.b32.xlu0 %v738, 6
    %v866 = vpop.permute.xlu0 %865
    %935 = vrot.lane.b32.xlu0 %v24, 9
    %v936 = vpop.permute.xlu0 %935
    %937 = vrot.lane.b32.xlu0 %v25, 9
    %v938 = vpop.permute.xlu0 %937
    %939 = vrot.lane.b32.xlu0 %v27, 9
    %v940 = vpop.permute.xlu0 %939
    %941 = vrot.lane.b32.xlu0 %v28, 9
    %v942 = vpop.permute.xlu0 %941
    %943 = vrot.lane.b32.xlu0 %v30, 9
    %v944 = vpop.permute.xlu0 %943
    %945 = vrot.lane.b32.xlu0 %v31, 9
    %v946 = vpop.permute.xlu0 %945
    %947 = vrot.lane.b32.xlu0 %v33, 9
    %v948 = vpop.permute.xlu0 %947
    %949 = vrot.lane.b32.xlu0 %v34, 9
    %v950 = vpop.permute.xlu0 %949
    %951 = vrot.lane.b32.xlu0 %v36, 9
    %v952 = vpop.permute.xlu0 %951
    %953 = vrot.lane.b32.xlu0 %v37, 9
    %v954 = vpop.permute.xlu0 %953
    %955 = vrot.lane.b32.xlu0 %v39, 9
    %v956 = vpop.permute.xlu0 %955
    %957 = vrot.lane.b32.xlu0 %v40, 9
    %v958 = vpop.permute.xlu0 %957
    %959 = vrot.lane.b32.xlu0 %v42, 9
    %v960 = vpop.permute.xlu0 %959
    %961 = vrot.lane.b32.xlu0 %v43, 9
    %v962 = vpop.permute.xlu0 %961
    %963 = vrot.lane.b32.xlu0 %v45, 9
    %v964 = vpop.permute.xlu0 %963
    %965 = vrot.lane.b32.xlu0 %v46, 9
    %v966 = vpop.permute.xlu0 %965
    %967 = vrot.lane.b32.xlu0 %v48, 9
    %v968 = vpop.permute.xlu0 %967
    %969 = vrot.lane.b32.xlu0 %v49, 9
    %v970 = vpop.permute.xlu0 %969
    %971 = vrot.lane.b32.xlu0 %v51, 9
    %v972 = vpop.permute.xlu0 %971
    %973 = vrot.lane.b32.xlu0 %v52, 9
    %v974 = vpop.permute.xlu0 %973
    %975 = vrot.lane.b32.xlu0 %v54, 9
    %v976 = vpop.permute.xlu0 %975
    %977 = vrot.lane.b32.xlu0 %v55, 9
    %v978 = vpop.permute.xlu0 %977
    %979 = vrot.lane.b32.xlu0 %v57, 9
    %v980 = vpop.permute.xlu0 %979
    %981 = vrot.lane.b32.xlu0 %v58, 9
    %v982 = vpop.permute.xlu0 %981
    %983 = vrot.lane.b32.xlu0 %v60, 9
    %v984 = vpop.permute.xlu0 %983
    %985 = vrot.lane.b32.xlu0 %v61, 9
    %v986 = vpop.permute.xlu0 %985
    %987 = vrot.lane.b32.xlu0 %v63, 9
    %v988 = vpop.permute.xlu0 %987
    %989 = vrot.lane.b32.xlu0 %v64, 9
    %v990 = vpop.permute.xlu0 %989
    %991 = vrot.lane.b32.xlu0 %v66, 9
    %v992 = vpop.permute.xlu0 %991
    %993 = vrot.lane.b32.xlu0 %v67, 9
    %v994 = vpop.permute.xlu0 %993
    %995 = vrot.lane.b32.xlu0 %v69, 9
    %v996 = vpop.permute.xlu0 %995
    %997 = vrot.lane.b32.xlu0 %v70, 9
    %v998 = vpop.permute.xlu0 %997
    %999 = vrot.lane.b32.xlu0 %v78, 9
    %v1000 = vpop.permute.xlu0 %999
    %1001 = vrot.lane.b32.xlu0 %v79, 9
    %v1002 = vpop.permute.xlu0 %1001
    %1003 = vrot.lane.b32.xlu0 %v81, 9
    %v1004 = vpop.permute.xlu0 %1003
    %1005 = vrot.lane.b32.xlu0 %v82, 9
    %v1006 = vpop.permute.xlu0 %1005
    %1007 = vrot.lane.b32.xlu0 %v84, 9
    %v1008 = vpop.permute.xlu0 %1007
    %1009 = vrot.lane.b32.xlu0 %v85, 9
    %v1010 = vpop.permute.xlu0 %1009
    %1011 = vrot.lane.b32.xlu0 %v87, 9
    %v1012 = vpop.permute.xlu0 %1011
    %1013 = vrot.lane.b32.xlu0 %v88, 9
    %v1014 = vpop.permute.xlu0 %1013
    %1015 = vrot.lane.b32.xlu0 %v90, 9
    %v1016 = vpop.permute.xlu0 %1015
    %1017 = vrot.lane.b32.xlu0 %v91, 9
    %v1018 = vpop.permute.xlu0 %1017
    %1019 = vrot.lane.b32.xlu0 %v93, 9
    %v1020 = vpop.permute.xlu0 %1019
    %1021 = vrot.lane.b32.xlu0 %v94, 9
    %v1022 = vpop.permute.xlu0 %1021
    %1023 = vrot.lane.b32.xlu0 %v96, 9
    %v1024 = vpop.permute.xlu0 %1023
    %1025 = vrot.lane.b32.xlu0 %v97, 9
    %v1026 = vpop.permute.xlu0 %1025
    %1027 = vrot.lane.b32.xlu0 %v99, 9
    %v1028 = vpop.permute.xlu0 %1027
    %1029 = vrot.lane.b32.xlu0 %v100, 9
    %v1030 = vpop.permute.xlu0 %1029
    %1031 = vrot.lane.b32.xlu0 %v102, 9
    %v1032 = vpop.permute.xlu0 %1031
    %1033 = vrot.lane.b32.xlu0 %v103, 9
    %v1034 = vpop.permute.xlu0 %1033
    %1035 = vrot.lane.b32.xlu0 %v105, 9
    %v1036 = vpop.permute.xlu0 %1035
    %1037 = vrot.lane.b32.xlu0 %v106, 9
    %v1038 = vpop.permute.xlu0 %1037
    %1039 = vrot.lane.b32.xlu0 %v108, 9
    %v1040 = vpop.permute.xlu0 %1039
    %1041 = vrot.lane.b32.xlu0 %v109, 9
    %v1042 = vpop.permute.xlu0 %1041
    %1043 = vrot.lane.b32.xlu0 %v111, 9
    %v1044 = vpop.permute.xlu0 %1043
    %1045 = vrot.lane.b32.xlu0 %v112, 9
    %v1046 = vpop.permute.xlu0 %1045
    %1047 = vrot.lane.b32.xlu0 %v114, 9
    %v1048 = vpop.permute.xlu0 %1047
    %1049 = vrot.lane.b32.xlu0 %v115, 9
    %v1050 = vpop.permute.xlu0 %1049
    %1051 = vrot.lane.b32.xlu0 %v117, 9
    %v1052 = vpop.permute.xlu0 %1051
    %1053 = vrot.lane.b32.xlu0 %v118, 9
    %v1054 = vpop.permute.xlu0 %1053
    %1055 = vrot.lane.b32.xlu0 %v120, 9
    %v1056 = vpop.permute.xlu0 %1055
    %1057 = vrot.lane.b32.xlu0 %v121, 9
    %v1058 = vpop.permute.xlu0 %1057
    %1059 = vrot.lane.b32.xlu0 %v123, 9
    %v1060 = vpop.permute.xlu0 %1059
    %1061 = vrot.lane.b32.xlu0 %v124, 9
    %v1062 = vpop.permute.xlu0 %1061
    %v1129 = vrot.slane %v69, 1
    %v1130 = vrot.slane %v70, 1
    %v1131 = vsel %vm225, %v1129, %v1130
    %v1132 = vrot.slane %v71, 1
    %v1133 = vsel %vm225, %v1130, %v1132
    %v1134 = vrot.slane %v123, 1
    %v1135 = vrot.slane %v124, 1
    %v1136 = vsel %vm225, %v1134, %v1135
    %v1137 = vrot.slane %v125, 1
    %v1138 = vsel %vm225, %v1135, %v1137
    %1139 = vrot.lane.b32.xlu0 %v233, 12
    %v1140 = vpop.permute.xlu0 %1139
    %1141 = vrot.lane.b32.xlu0 %v235, 12
    %v1142 = vpop.permute.xlu0 %1141
    %1143 = vrot.lane.b32.xlu0 %v238, 12
    %v1144 = vpop.permute.xlu0 %1143
    %1145 = vrot.lane.b32.xlu0 %v240, 12
    %v1146 = vpop.permute.xlu0 %1145
    %1147 = vrot.lane.b32.xlu0 %v243, 12
    %v1148 = vpop.permute.xlu0 %1147
    %1149 = vrot.lane.b32.xlu0 %v245, 12
    %v1150 = vpop.permute.xlu0 %1149
    %1151 = vrot.lane.b32.xlu0 %v248, 12
    %v1152 = vpop.permute.xlu0 %1151
    %1153 = vrot.lane.b32.xlu0 %v250, 12
    %v1154 = vpop.permute.xlu0 %1153
    %1155 = vrot.lane.b32.xlu0 %v253, 12
    %v1156 = vpop.permute.xlu0 %1155
    %1157 = vrot.lane.b32.xlu0 %v255, 12
    %v1158 = vpop.permute.xlu0 %1157
    %1159 = vrot.lane.b32.xlu0 %v258, 12
    %v1160 = vpop.permute.xlu0 %1159
    %1161 = vrot.lane.b32.xlu0 %v260, 12
    %v1162 = vpop.permute.xlu0 %1161
    %1163 = vrot.lane.b32.xlu0 %v263, 12
    %v1164 = vpop.permute.xlu0 %1163
    %1165 = vrot.lane.b32.xlu0 %v265, 12
    %v1166 = vpop.permute.xlu0 %1165
    %1167 = vrot.lane.b32.xlu0 %v268, 12
    %v1168 = vpop.permute.xlu0 %1167
    %1169 = vrot.lane.b32.xlu0 %v270, 12
    %v1170 = vpop.permute.xlu0 %1169
    %1171 = vrot.lane.b32.xlu0 %v273, 12
    %v1172 = vpop.permute.xlu0 %1171
    %1173 = vrot.lane.b32.xlu0 %v275, 12
    %v1174 = vpop.permute.xlu0 %1173
    %1175 = vrot.lane.b32.xlu0 %v278, 12
    %v1176 = vpop.permute.xlu0 %1175
    %1177 = vrot.lane.b32.xlu0 %v280, 12
    %v1178 = vpop.permute.xlu0 %1177
    %1179 = vrot.lane.b32.xlu0 %v283, 12
    %v1180 = vpop.permute.xlu0 %1179
    %1181 = vrot.lane.b32.xlu0 %v285, 12
    %v1182 = vpop.permute.xlu0 %1181
    %1183 = vrot.lane.b32.xlu0 %v288, 12
    %v1184 = vpop.permute.xlu0 %1183
    %1185 = vrot.lane.b32.xlu0 %v290, 12
    %v1186 = vpop.permute.xlu0 %1185
    %1187 = vrot.lane.b32.xlu0 %v293, 12
    %v1188 = vpop.permute.xlu0 %1187
    %1189 = vrot.lane.b32.xlu0 %v295, 12
    %v1190 = vpop.permute.xlu0 %1189
    %1191 = vrot.lane.b32.xlu0 %v298, 12
    %v1192 = vpop.permute.xlu0 %1191
    %1193 = vrot.lane.b32.xlu0 %v300, 12
    %v1194 = vpop.permute.xlu0 %1193
    %1195 = vrot.lane.b32.xlu0 %v303, 12
    %v1196 = vpop.permute.xlu0 %1195
    %1197 = vrot.lane.b32.xlu0 %v305, 12
    %v1198 = vpop.permute.xlu0 %1197
    %1199 = vrot.lane.b32.xlu0 %v1131, 12
    %v1200 = vpop.permute.xlu0 %1199
    %1201 = vrot.lane.b32.xlu0 %v1133, 12
    %v1202 = vpop.permute.xlu0 %1201
    %1203 = vrot.lane.b32.xlu0 %v313, 12
    %v1204 = vpop.permute.xlu0 %1203
    %1205 = vrot.lane.b32.xlu0 %v315, 12
    %v1206 = vpop.permute.xlu0 %1205
    %1207 = vrot.lane.b32.xlu0 %v318, 12
    %v1208 = vpop.permute.xlu0 %1207
    %1209 = vrot.lane.b32.xlu0 %v320, 12
    %v1210 = vpop.permute.xlu0 %1209
    %1211 = vrot.lane.b32.xlu0 %v323, 12
    %v1212 = vpop.permute.xlu0 %1211
    %1213 = vrot.lane.b32.xlu0 %v325, 12
    %v1214 = vpop.permute.xlu0 %1213
    %1215 = vrot.lane.b32.xlu0 %v328, 12
    %v1216 = vpop.permute.xlu0 %1215
    %1217 = vrot.lane.b32.xlu0 %v330, 12
    %v1218 = vpop.permute.xlu0 %1217
    %1219 = vrot.lane.b32.xlu0 %v333, 12
    %v1220 = vpop.permute.xlu0 %1219
    %1221 = vrot.lane.b32.xlu0 %v335, 12
    %v1222 = vpop.permute.xlu0 %1221
    %1223 = vrot.lane.b32.xlu0 %v338, 12
    %v1224 = vpop.permute.xlu0 %1223
    %1225 = vrot.lane.b32.xlu0 %v340, 12
    %v1226 = vpop.permute.xlu0 %1225
    %1227 = vrot.lane.b32.xlu0 %v343, 12
    %v1228 = vpop.permute.xlu0 %1227
    %1229 = vrot.lane.b32.xlu0 %v345, 12
    %v1230 = vpop.permute.xlu0 %1229
    %1231 = vrot.lane.b32.xlu0 %v348, 12
    %v1232 = vpop.permute.xlu0 %1231
    %1233 = vrot.lane.b32.xlu0 %v350, 12
    %v1234 = vpop.permute.xlu0 %1233
    %1235 = vrot.lane.b32.xlu0 %v353, 12
    %v1236 = vpop.permute.xlu0 %1235
    %1237 = vrot.lane.b32.xlu0 %v355, 12
    %v1238 = vpop.permute.xlu0 %1237
    %1239 = vrot.lane.b32.xlu0 %v358, 12
    %v1240 = vpop.permute.xlu0 %1239
    %1241 = vrot.lane.b32.xlu0 %v360, 12
    %v1242 = vpop.permute.xlu0 %1241
    %1243 = vrot.lane.b32.xlu0 %v363, 12
    %v1244 = vpop.permute.xlu0 %1243
    %1245 = vrot.lane.b32.xlu0 %v365, 12
    %v1246 = vpop.permute.xlu0 %1245
    %1247 = vrot.lane.b32.xlu0 %v368, 12
    %v1248 = vpop.permute.xlu0 %1247
    %1249 = vrot.lane.b32.xlu0 %v370, 12
    %v1250 = vpop.permute.xlu0 %1249
    %1251 = vrot.lane.b32.xlu0 %v373, 12
    %v1252 = vpop.permute.xlu0 %1251
    %1253 = vrot.lane.b32.xlu0 %v375, 12
    %v1254 = vpop.permute.xlu0 %1253
    %1255 = vrot.lane.b32.xlu0 %v378, 12
    %v1256 = vpop.permute.xlu0 %1255
    %1257 = vrot.lane.b32.xlu0 %v380, 12
    %v1258 = vpop.permute.xlu0 %1257
    %1259 = vrot.lane.b32.xlu0 %v383, 12
    %v1260 = vpop.permute.xlu0 %1259
    %1261 = vrot.lane.b32.xlu0 %v385, 12
    %v1262 = vpop.permute.xlu0 %1261
    %1263 = vrot.lane.b32.xlu0 %v1136, 12
    %v1264 = vpop.permute.xlu0 %1263
    %1265 = vrot.lane.b32.xlu0 %v1138, 12
    %v1266 = vpop.permute.xlu0 %1265
    %v1331 = vrot.slane %v69, 2
    %v1332 = vrot.slane %v70, 2
    %v1333 = vsel %vm578, %v1331, %v1332
    %v1334 = vrot.slane %v71, 2
    %v1335 = vsel %vm578, %v1332, %v1334
    %v1336 = vrot.slane %v123, 2
    %v1337 = vrot.slane %v124, 2
    %v1338 = vsel %vm578, %v1336, %v1337
    %v1339 = vrot.slane %v125, 2
    %v1340 = vsel %vm578, %v1337, %v1339
    %1341 = vrot.lane.b32.xlu0 %v586, 15
    %v1342 = vpop.permute.xlu0 %1341
    %1343 = vrot.lane.b32.xlu0 %v588, 15
    %v1344 = vpop.permute.xlu0 %1343
    %1345 = vrot.lane.b32.xlu0 %v591, 15
    %v1346 = vpop.permute.xlu0 %1345
    %1347 = vrot.lane.b32.xlu0 %v593, 15
    %v1348 = vpop.permute.xlu0 %1347
    %1349 = vrot.lane.b32.xlu0 %v596, 15
    %v1350 = vpop.permute.xlu0 %1349
    %1351 = vrot.lane.b32.xlu0 %v598, 15
    %v1352 = vpop.permute.xlu0 %1351
    %1353 = vrot.lane.b32.xlu0 %v601, 15
    %v1354 = vpop.permute.xlu0 %1353
    %1355 = vrot.lane.b32.xlu0 %v603, 15
    %v1356 = vpop.permute.xlu0 %1355
    %1357 = vrot.lane.b32.xlu0 %v606, 15
    %v1358 = vpop.permute.xlu0 %1357
    %1359 = vrot.lane.b32.xlu0 %v608, 15
    %v1360 = vpop.permute.xlu0 %1359
    %1361 = vrot.lane.b32.xlu0 %v611, 15
    %v1362 = vpop.permute.xlu0 %1361
    %1363 = vrot.lane.b32.xlu0 %v613, 15
    %v1364 = vpop.permute.xlu0 %1363
    %1365 = vrot.lane.b32.xlu0 %v616, 15
    %v1366 = vpop.permute.xlu0 %1365
    %1367 = vrot.lane.b32.xlu0 %v618, 15
    %v1368 = vpop.permute.xlu0 %1367
    %1369 = vrot.lane.b32.xlu0 %v621, 15
    %v1370 = vpop.permute.xlu0 %1369
    %1371 = vrot.lane.b32.xlu0 %v623, 15
    %v1372 = vpop.permute.xlu0 %1371
    %1373 = vrot.lane.b32.xlu0 %v626, 15
    %v1374 = vpop.permute.xlu0 %1373
    %1375 = vrot.lane.b32.xlu0 %v628, 15
    %v1376 = vpop.permute.xlu0 %1375
    %1377 = vrot.lane.b32.xlu0 %v631, 15
    %v1378 = vpop.permute.xlu0 %1377
    %1379 = vrot.lane.b32.xlu0 %v633, 15
    %v1380 = vpop.permute.xlu0 %1379
    %1381 = vrot.lane.b32.xlu0 %v636, 15
    %v1382 = vpop.permute.xlu0 %1381
    %1383 = vrot.lane.b32.xlu0 %v638, 15
    %v1384 = vpop.permute.xlu0 %1383
    %1385 = vrot.lane.b32.xlu0 %v641, 15
    %v1386 = vpop.permute.xlu0 %1385
    %1387 = vrot.lane.b32.xlu0 %v643, 15
    %v1388 = vpop.permute.xlu0 %1387
    %1389 = vrot.lane.b32.xlu0 %v646, 15
    %v1390 = vpop.permute.xlu0 %1389
    %1391 = vrot.lane.b32.xlu0 %v648, 15
    %v1392 = vpop.permute.xlu0 %1391
    %1393 = vrot.lane.b32.xlu0 %v651, 15
    %v1394 = vpop.permute.xlu0 %1393
    %1395 = vrot.lane.b32.xlu0 %v653, 15
    %v1396 = vpop.permute.xlu0 %1395
    %1397 = vrot.lane.b32.xlu0 %v656, 15
    %v1398 = vpop.permute.xlu0 %1397
    %1399 = vrot.lane.b32.xlu0 %v658, 15
    %v1400 = vpop.permute.xlu0 %1399
    %1401 = vrot.lane.b32.xlu0 %v1333, 15
    %v1402 = vpop.permute.xlu0 %1401
    %1403 = vrot.lane.b32.xlu0 %v1335, 15
    %v1404 = vpop.permute.xlu0 %1403
    %1405 = vrot.lane.b32.xlu0 %v666, 15
    %v1406 = vpop.permute.xlu0 %1405
    %1407 = vrot.lane.b32.xlu0 %v668, 15
    %v1408 = vpop.permute.xlu0 %1407
    %1409 = vrot.lane.b32.xlu0 %v671, 15
    %v1410 = vpop.permute.xlu0 %1409
    %1411 = vrot.lane.b32.xlu0 %v673, 15
    %v1412 = vpop.permute.xlu0 %1411
    %1413 = vrot.lane.b32.xlu0 %v676, 15
    %v1414 = vpop.permute.xlu0 %1413
    %1415 = vrot.lane.b32.xlu0 %v678, 15
    %v1416 = vpop.permute.xlu0 %1415
    %1417 = vrot.lane.b32.xlu0 %v681, 15
    %v1418 = vpop.permute.xlu0 %1417
    %1419 = vrot.lane.b32.xlu0 %v683, 15
    %v1420 = vpop.permute.xlu0 %1419
    %1421 = vrot.lane.b32.xlu0 %v686, 15
    %v1422 = vpop.permute.xlu0 %1421
    %1423 = vrot.lane.b32.xlu0 %v688, 15
    %v1424 = vpop.permute.xlu0 %1423
    %1425 = vrot.lane.b32.xlu0 %v691, 15
    %v1426 = vpop.permute.xlu0 %1425
    %1427 = vrot.lane.b32.xlu0 %v693, 15
    %v1428 = vpop.permute.xlu0 %1427
    %1429 = vrot.lane.b32.xlu0 %v696, 15
    %v1430 = vpop.permute.xlu0 %1429
    %1431 = vrot.lane.b32.xlu0 %v698, 15
    %v1432 = vpop.permute.xlu0 %1431
    %1433 = vrot.lane.b32.xlu0 %v701, 15
    %v1434 = vpop.permute.xlu0 %1433
    %1435 = vrot.lane.b32.xlu0 %v703, 15
    %v1436 = vpop.permute.xlu0 %1435
    %1437 = vrot.lane.b32.xlu0 %v706, 15
    %v1438 = vpop.permute.xlu0 %1437
    %1439 = vrot.lane.b32.xlu0 %v708, 15
    %v1440 = vpop.permute.xlu0 %1439
    %1441 = vrot.lane.b32.xlu0 %v711, 15
    %v1442 = vpop.permute.xlu0 %1441
    %1443 = vrot.lane.b32.xlu0 %v713, 15
    %v1444 = vpop.permute.xlu0 %1443
    %1445 = vrot.lane.b32.xlu0 %v716, 15
    %v1446 = vpop.permute.xlu0 %1445
    %1447 = vrot.lane.b32.xlu0 %v718, 15
    %v1448 = vpop.permute.xlu0 %1447
    %1449 = vrot.lane.b32.xlu0 %v721, 15
    %v1450 = vpop.permute.xlu0 %1449
    %1451 = vrot.lane.b32.xlu0 %v723, 15
    %v1452 = vpop.permute.xlu0 %1451
    %1453 = vrot.lane.b32.xlu0 %v726, 15
    %v1454 = vpop.permute.xlu0 %1453
    %1455 = vrot.lane.b32.xlu0 %v728, 15
    %v1456 = vpop.permute.xlu0 %1455
    %1457 = vrot.lane.b32.xlu0 %v731, 15
    %v1458 = vpop.permute.xlu0 %1457
    %1459 = vrot.lane.b32.xlu0 %v733, 15
    %v1460 = vpop.permute.xlu0 %1459
    %1461 = vrot.lane.b32.xlu0 %v736, 15
    %v1462 = vpop.permute.xlu0 %1461
    %1463 = vrot.lane.b32.xlu0 %v738, 15
    %v1464 = vpop.permute.xlu0 %1463
    %1465 = vrot.lane.b32.xlu0 %v1338, 15
    %v1466 = vpop.permute.xlu0 %1465
    %1467 = vrot.lane.b32.xlu0 %v1340, 15
    %v1468 = vpop.permute.xlu0 %1467
    %1537 = vrot.lane.b32.xlu0 %v27, 18
    %v1538 = vpop.permute.xlu0 %1537
    %1539 = vrot.lane.b32.xlu0 %v28, 18
    %v1540 = vpop.permute.xlu0 %1539
    %1541 = vrot.lane.b32.xlu0 %v30, 18
    %v1542 = vpop.permute.xlu0 %1541
    %1543 = vrot.lane.b32.xlu0 %v31, 18
    %v1544 = vpop.permute.xlu0 %1543
    %1545 = vrot.lane.b32.xlu0 %v33, 18
    %v1546 = vpop.permute.xlu0 %1545
    %1547 = vrot.lane.b32.xlu0 %v34, 18
    %v1548 = vpop.permute.xlu0 %1547
    %1549 = vrot.lane.b32.xlu0 %v36, 18
    %v1550 = vpop.permute.xlu0 %1549
    %1551 = vrot.lane.b32.xlu0 %v37, 18
    %v1552 = vpop.permute.xlu0 %1551
    %1553 = vrot.lane.b32.xlu0 %v39, 18
    %v1554 = vpop.permute.xlu0 %1553
    %1555 = vrot.lane.b32.xlu0 %v40, 18
    %v1556 = vpop.permute.xlu0 %1555
    %1557 = vrot.lane.b32.xlu0 %v42, 18
    %v1558 = vpop.permute.xlu0 %1557
    %1559 = vrot.lane.b32.xlu0 %v43, 18
    %v1560 = vpop.permute.xlu0 %1559
    %1561 = vrot.lane.b32.xlu0 %v45, 18
    %v1562 = vpop.permute.xlu0 %1561
    %1563 = vrot.lane.b32.xlu0 %v46, 18
    %v1564 = vpop.permute.xlu0 %1563
    %1565 = vrot.lane.b32.xlu0 %v48, 18
    %v1566 = vpop.permute.xlu0 %1565
    %1567 = vrot.lane.b32.xlu0 %v49, 18
    %v1568 = vpop.permute.xlu0 %1567
    %1569 = vrot.lane.b32.xlu0 %v51, 18
    %v1570 = vpop.permute.xlu0 %1569
    %1571 = vrot.lane.b32.xlu0 %v52, 18
    %v1572 = vpop.permute.xlu0 %1571
    %1573 = vrot.lane.b32.xlu0 %v54, 18
    %v1574 = vpop.permute.xlu0 %1573
    %1575 = vrot.lane.b32.xlu0 %v55, 18
    %v1576 = vpop.permute.xlu0 %1575
    %1577 = vrot.lane.b32.xlu0 %v57, 18
    %v1578 = vpop.permute.xlu0 %1577
    %1579 = vrot.lane.b32.xlu0 %v58, 18
    %v1580 = vpop.permute.xlu0 %1579
    %1581 = vrot.lane.b32.xlu0 %v60, 18
    %v1582 = vpop.permute.xlu0 %1581
    %1583 = vrot.lane.b32.xlu0 %v61, 18
    %v1584 = vpop.permute.xlu0 %1583
    %1585 = vrot.lane.b32.xlu0 %v63, 18
    %v1586 = vpop.permute.xlu0 %1585
    %1587 = vrot.lane.b32.xlu0 %v64, 18
    %v1588 = vpop.permute.xlu0 %1587
    %1589 = vrot.lane.b32.xlu0 %v66, 18
    %v1590 = vpop.permute.xlu0 %1589
    %1591 = vrot.lane.b32.xlu0 %v67, 18
    %v1592 = vpop.permute.xlu0 %1591
    %1593 = vrot.lane.b32.xlu0 %v69, 18
    %v1594 = vpop.permute.xlu0 %1593
    %1595 = vrot.lane.b32.xlu0 %v70, 18
    %v1596 = vpop.permute.xlu0 %1595
    %1597 = vrot.lane.b32.xlu0 %v72, 18
    %v1598 = vpop.permute.xlu0 %1597
    %1599 = vrot.lane.b32.xlu0 %v73, 18
    %v1600 = vpop.permute.xlu0 %1599
    %1601 = vrot.lane.b32.xlu0 %v81, 18
    %v1602 = vpop.permute.xlu0 %1601
    %1603 = vrot.lane.b32.xlu0 %v82, 18
    %v1604 = vpop.permute.xlu0 %1603
    %1605 = vrot.lane.b32.xlu0 %v84, 18
    %v1606 = vpop.permute.xlu0 %1605
    %1607 = vrot.lane.b32.xlu0 %v85, 18
    %v1608 = vpop.permute.xlu0 %1607
    %1609 = vrot.lane.b32.xlu0 %v87, 18
    %v1610 = vpop.permute.xlu0 %1609
    %1611 = vrot.lane.b32.xlu0 %v88, 18
    %v1612 = vpop.permute.xlu0 %1611
    %1613 = vrot.lane.b32.xlu0 %v90, 18
    %v1614 = vpop.permute.xlu0 %1613
    %1615 = vrot.lane.b32.xlu0 %v91, 18
    %v1616 = vpop.permute.xlu0 %1615
    %1617 = vrot.lane.b32.xlu0 %v93, 18
    %v1618 = vpop.permute.xlu0 %1617
    %1619 = vrot.lane.b32.xlu0 %v94, 18
    %v1620 = vpop.permute.xlu0 %1619
    %1621 = vrot.lane.b32.xlu0 %v96, 18
    %v1622 = vpop.permute.xlu0 %1621
    %1623 = vrot.lane.b32.xlu0 %v97, 18
    %v1624 = vpop.permute.xlu0 %1623
    %1625 = vrot.lane.b32.xlu0 %v99, 18
    %v1626 = vpop.permute.xlu0 %1625
    %1627 = vrot.lane.b32.xlu0 %v100, 18
    %v1628 = vpop.permute.xlu0 %1627
    %1629 = vrot.lane.b32.xlu0 %v102, 18
    %v1630 = vpop.permute.xlu0 %1629
    %1631 = vrot.lane.b32.xlu0 %v103, 18
    %v1632 = vpop.permute.xlu0 %1631
    %1633 = vrot.lane.b32.xlu0 %v105, 18
    %v1634 = vpop.permute.xlu0 %1633
    %1635 = vrot.lane.b32.xlu0 %v106, 18
    %v1636 = vpop.permute.xlu0 %1635
    %1637 = vrot.lane.b32.xlu0 %v108, 18
    %v1638 = vpop.permute.xlu0 %1637
    %1639 = vrot.lane.b32.xlu0 %v109, 18
    %v1640 = vpop.permute.xlu0 %1639
    %1641 = vrot.lane.b32.xlu0 %v111, 18
    %v1642 = vpop.permute.xlu0 %1641
    %1643 = vrot.lane.b32.xlu0 %v112, 18
    %v1644 = vpop.permute.xlu0 %1643
    %1645 = vrot.lane.b32.xlu0 %v114, 18
    %v1646 = vpop.permute.xlu0 %1645
    %1647 = vrot.lane.b32.xlu0 %v115, 18
    %v1648 = vpop.permute.xlu0 %1647
    %1649 = vrot.lane.b32.xlu0 %v117, 18
    %v1650 = vpop.permute.xlu0 %1649
    %1651 = vrot.lane.b32.xlu0 %v118, 18
    %v1652 = vpop.permute.xlu0 %1651
    %1653 = vrot.lane.b32.xlu0 %v120, 18
    %v1654 = vpop.permute.xlu0 %1653
    %1655 = vrot.lane.b32.xlu0 %v121, 18
    %v1656 = vpop.permute.xlu0 %1655
    %1657 = vrot.lane.b32.xlu0 %v123, 18
    %v1658 = vpop.permute.xlu0 %1657
    %1659 = vrot.lane.b32.xlu0 %v124, 18
    %v1660 = vpop.permute.xlu0 %1659
    %1661 = vrot.lane.b32.xlu0 %v126, 18
    %v1662 = vpop.permute.xlu0 %1661
    %1663 = vrot.lane.b32.xlu0 %v127, 18
    %v1664 = vpop.permute.xlu0 %1663
    %v1731 = vrot.slane %v72, 1
    %v1732 = vrot.slane %v73, 1
    %v1733 = vsel %vm225, %v1731, %v1732
    %v1734 = vrot.slane %v74, 1
    %v1735 = vsel %vm225, %v1732, %v1734
    %v1736 = vrot.slane %v126, 1
    %v1737 = vrot.slane %v127, 1
    %v1738 = vsel %vm225, %v1736, %v1737
    %v1739 = vrot.slane %v128, 1
    %v1740 = vsel %vm225, %v1737, %v1739
    %1741 = vrot.lane.b32.xlu0 %v238, 21
    %v1742 = vpop.permute.xlu0 %1741
    %1743 = vrot.lane.b32.xlu0 %v240, 21
    %v1744 = vpop.permute.xlu0 %1743
    %1745 = vrot.lane.b32.xlu0 %v243, 21
    %v1746 = vpop.permute.xlu0 %1745
    %1747 = vrot.lane.b32.xlu0 %v245, 21
    %v1748 = vpop.permute.xlu0 %1747
    %1749 = vrot.lane.b32.xlu0 %v248, 21
    %v1750 = vpop.permute.xlu0 %1749
    %1751 = vrot.lane.b32.xlu0 %v250, 21
    %v1752 = vpop.permute.xlu0 %1751
    %1753 = vrot.lane.b32.xlu0 %v253, 21
    %v1754 = vpop.permute.xlu0 %1753
    %1755 = vrot.lane.b32.xlu0 %v255, 21
    %v1756 = vpop.permute.xlu0 %1755
    %1757 = vrot.lane.b32.xlu0 %v258, 21
    %v1758 = vpop.permute.xlu0 %1757
    %1759 = vrot.lane.b32.xlu0 %v260, 21
    %v1760 = vpop.permute.xlu0 %1759
    %1761 = vrot.lane.b32.xlu0 %v263, 21
    %v1762 = vpop.permute.xlu0 %1761
    %1763 = vrot.lane.b32.xlu0 %v265, 21
    %v1764 = vpop.permute.xlu0 %1763
    %1765 = vrot.lane.b32.xlu0 %v268, 21
    %v1766 = vpop.permute.xlu0 %1765
    %1767 = vrot.lane.b32.xlu0 %v270, 21
    %v1768 = vpop.permute.xlu0 %1767
    %1769 = vrot.lane.b32.xlu0 %v273, 21
    %v1770 = vpop.permute.xlu0 %1769
    %1771 = vrot.lane.b32.xlu0 %v275, 21
    %v1772 = vpop.permute.xlu0 %1771
    %1773 = vrot.lane.b32.xlu0 %v278, 21
    %v1774 = vpop.permute.xlu0 %1773
    %1775 = vrot.lane.b32.xlu0 %v280, 21
    %v1776 = vpop.permute.xlu0 %1775
    %1777 = vrot.lane.b32.xlu0 %v283, 21
    %v1778 = vpop.permute.xlu0 %1777
    %1779 = vrot.lane.b32.xlu0 %v285, 21
    %v1780 = vpop.permute.xlu0 %1779
    %1781 = vrot.lane.b32.xlu0 %v288, 21
    %v1782 = vpop.permute.xlu0 %1781
    %1783 = vrot.lane.b32.xlu0 %v290, 21
    %v1784 = vpop.permute.xlu0 %1783
    %1785 = vrot.lane.b32.xlu0 %v293, 21
    %v1786 = vpop.permute.xlu0 %1785
    %1787 = vrot.lane.b32.xlu0 %v295, 21
    %v1788 = vpop.permute.xlu0 %1787
    %1789 = vrot.lane.b32.xlu0 %v298, 21
    %v1790 = vpop.permute.xlu0 %1789
    %1791 = vrot.lane.b32.xlu0 %v300, 21
    %v1792 = vpop.permute.xlu0 %1791
    %1793 = vrot.lane.b32.xlu0 %v303, 21
    %v1794 = vpop.permute.xlu0 %1793
    %1795 = vrot.lane.b32.xlu0 %v305, 21
    %v1796 = vpop.permute.xlu0 %1795
    %1797 = vrot.lane.b32.xlu0 %v1131, 21
    %v1798 = vpop.permute.xlu0 %1797
    %1799 = vrot.lane.b32.xlu0 %v1133, 21
    %v1800 = vpop.permute.xlu0 %1799
    %1801 = vrot.lane.b32.xlu0 %v1733, 21
    %v1802 = vpop.permute.xlu0 %1801
    %1803 = vrot.lane.b32.xlu0 %v1735, 21
    %v1804 = vpop.permute.xlu0 %1803
    %1805 = vrot.lane.b32.xlu0 %v318, 21
    %v1806 = vpop.permute.xlu0 %1805
    %1807 = vrot.lane.b32.xlu0 %v320, 21
    %v1808 = vpop.permute.xlu0 %1807
    %1809 = vrot.lane.b32.xlu0 %v323, 21
    %v1810 = vpop.permute.xlu0 %1809
    %1811 = vrot.lane.b32.xlu0 %v325, 21
    %v1812 = vpop.permute.xlu0 %1811
    %1813 = vrot.lane.b32.xlu0 %v328, 21
    %v1814 = vpop.permute.xlu0 %1813
    %1815 = vrot.lane.b32.xlu0 %v330, 21
    %v1816 = vpop.permute.xlu0 %1815
    %1817 = vrot.lane.b32.xlu0 %v333, 21
    %v1818 = vpop.permute.xlu0 %1817
    %1819 = vrot.lane.b32.xlu0 %v335, 21
    %v1820 = vpop.permute.xlu0 %1819
    %1821 = vrot.lane.b32.xlu0 %v338, 21
    %v1822 = vpop.permute.xlu0 %1821
    %1823 = vrot.lane.b32.xlu0 %v340, 21
    %v1824 = vpop.permute.xlu0 %1823
    %1825 = vrot.lane.b32.xlu0 %v343, 21
    %v1826 = vpop.permute.xlu0 %1825
    %1827 = vrot.lane.b32.xlu0 %v345, 21
    %v1828 = vpop.permute.xlu0 %1827
    %1829 = vrot.lane.b32.xlu0 %v348, 21
    %v1830 = vpop.permute.xlu0 %1829
    %1831 = vrot.lane.b32.xlu0 %v350, 21
    %v1832 = vpop.permute.xlu0 %1831
    %1833 = vrot.lane.b32.xlu0 %v353, 21
    %v1834 = vpop.permute.xlu0 %1833
    %1835 = vrot.lane.b32.xlu0 %v355, 21
    %v1836 = vpop.permute.xlu0 %1835
    %1837 = vrot.lane.b32.xlu0 %v358, 21
    %v1838 = vpop.permute.xlu0 %1837
    %1839 = vrot.lane.b32.xlu0 %v360, 21
    %v1840 = vpop.permute.xlu0 %1839
    %1841 = vrot.lane.b32.xlu0 %v363, 21
    %v1842 = vpop.permute.xlu0 %1841
    %1843 = vrot.lane.b32.xlu0 %v365, 21
    %v1844 = vpop.permute.xlu0 %1843
    %1845 = vrot.lane.b32.xlu0 %v368, 21
    %v1846 = vpop.permute.xlu0 %1845
    %1847 = vrot.lane.b32.xlu0 %v370, 21
    %v1848 = vpop.permute.xlu0 %1847
    %1849 = vrot.lane.b32.xlu0 %v373, 21
    %v1850 = vpop.permute.xlu0 %1849
    %1851 = vrot.lane.b32.xlu0 %v375, 21
    %v1852 = vpop.permute.xlu0 %1851
    %1853 = vrot.lane.b32.xlu0 %v378, 21
    %v1854 = vpop.permute.xlu0 %1853
    %1855 = vrot.lane.b32.xlu0 %v380, 21
    %v1856 = vpop.permute.xlu0 %1855
    %1857 = vrot.lane.b32.xlu0 %v383, 21
    %v1858 = vpop.permute.xlu0 %1857
    %1859 = vrot.lane.b32.xlu0 %v385, 21
    %v1860 = vpop.permute.xlu0 %1859
    %1861 = vrot.lane.b32.xlu0 %v1136, 21
    %v1862 = vpop.permute.xlu0 %1861
    %1863 = vrot.lane.b32.xlu0 %v1138, 21
    %v1864 = vpop.permute.xlu0 %1863
    %1865 = vrot.lane.b32.xlu0 %v1738, 21
    %v1866 = vpop.permute.xlu0 %1865
    %1867 = vrot.lane.b32.xlu0 %v1740, 21
    %v1868 = vpop.permute.xlu0 %1867
    %v1933 = vrot.slane %v72, 2
    %v1934 = vrot.slane %v73, 2
    %v1935 = vsel %vm578, %v1933, %v1934
    %v1936 = vrot.slane %v74, 2
    %v1937 = vsel %vm578, %v1934, %v1936
    %v1938 = vrot.slane %v126, 2
    %v1939 = vrot.slane %v127, 2
    %v1940 = vsel %vm578, %v1938, %v1939
    %v1941 = vrot.slane %v128, 2
    %v1942 = vsel %vm578, %v1939, %v1941
    %1943 = vrot.lane.b32.xlu0 %v591, 24
    %v1944 = vpop.permute.xlu0 %1943
    %1945 = vrot.lane.b32.xlu0 %v593, 24
    %v1946 = vpop.permute.xlu0 %1945
    %1947 = vrot.lane.b32.xlu0 %v596, 24
    %v1948 = vpop.permute.xlu0 %1947
    %1949 = vrot.lane.b32.xlu0 %v598, 24
    %v1950 = vpop.permute.xlu0 %1949
    %1951 = vrot.lane.b32.xlu0 %v601, 24
    %v1952 = vpop.permute.xlu0 %1951
    %1953 = vrot.lane.b32.xlu0 %v603, 24
    %v1954 = vpop.permute.xlu0 %1953
    %1955 = vrot.lane.b32.xlu0 %v606, 24
    %v1956 = vpop.permute.xlu0 %1955
    %1957 = vrot.lane.b32.xlu0 %v608, 24
    %v1958 = vpop.permute.xlu0 %1957
    %1959 = vrot.lane.b32.xlu0 %v611, 24
    %v1960 = vpop.permute.xlu0 %1959
    %1961 = vrot.lane.b32.xlu0 %v613, 24
    %v1962 = vpop.permute.xlu0 %1961
    %1963 = vrot.lane.b32.xlu0 %v616, 24
    %v1964 = vpop.permute.xlu0 %1963
    %1965 = vrot.lane.b32.xlu0 %v618, 24
    %v1966 = vpop.permute.xlu0 %1965
    %1967 = vrot.lane.b32.xlu0 %v621, 24
    %v1968 = vpop.permute.xlu0 %1967
    %1969 = vrot.lane.b32.xlu0 %v623, 24
    %v1970 = vpop.permute.xlu0 %1969
    %1971 = vrot.lane.b32.xlu0 %v626, 24
    %v1972 = vpop.permute.xlu0 %1971
    %1973 = vrot.lane.b32.xlu0 %v628, 24
    %v1974 = vpop.permute.xlu0 %1973
    %1975 = vrot.lane.b32.xlu0 %v631, 24
    %v1976 = vpop.permute.xlu0 %1975
    %1977 = vrot.lane.b32.xlu0 %v633, 24
    %v1978 = vpop.permute.xlu0 %1977
    %1979 = vrot.lane.b32.xlu0 %v636, 24
    %v1980 = vpop.permute.xlu0 %1979
    %1981 = vrot.lane.b32.xlu0 %v638, 24
    %v1982 = vpop.permute.xlu0 %1981
    %1983 = vrot.lane.b32.xlu0 %v641, 24
    %v1984 = vpop.permute.xlu0 %1983
    %1985 = vrot.lane.b32.xlu0 %v643, 24
    %v1986 = vpop.permute.xlu0 %1985
    %1987 = vrot.lane.b32.xlu0 %v646, 24
    %v1988 = vpop.permute.xlu0 %1987
    %1989 = vrot.lane.b32.xlu0 %v648, 24
    %v1990 = vpop.permute.xlu0 %1989
    %1991 = vrot.lane.b32.xlu0 %v651, 24
    %v1992 = vpop.permute.xlu0 %1991
    %1993 = vrot.lane.b32.xlu0 %v653, 24
    %v1994 = vpop.permute.xlu0 %1993
    %1995 = vrot.lane.b32.xlu0 %v656, 24
    %v1996 = vpop.permute.xlu0 %1995
    %1997 = vrot.lane.b32.xlu0 %v658, 24
    %v1998 = vpop.permute.xlu0 %1997
    %1999 = vrot.lane.b32.xlu0 %v1333, 24
    %v2000 = vpop.permute.xlu0 %1999
    %2001 = vrot.lane.b32.xlu0 %v1335, 24
    %v2002 = vpop.permute.xlu0 %2001
    %2003 = vrot.lane.b32.xlu0 %v1935, 24
    %v2004 = vpop.permute.xlu0 %2003
    %2005 = vrot.lane.b32.xlu0 %v1937, 24
    %v2006 = vpop.permute.xlu0 %2005
    %2007 = vrot.lane.b32.xlu0 %v671, 24
    %v2008 = vpop.permute.xlu0 %2007
    %2009 = vrot.lane.b32.xlu0 %v673, 24
    %v2010 = vpop.permute.xlu0 %2009
    %2011 = vrot.lane.b32.xlu0 %v676, 24
    %v2012 = vpop.permute.xlu0 %2011
    %2013 = vrot.lane.b32.xlu0 %v678, 24
    %v2014 = vpop.permute.xlu0 %2013
    %2015 = vrot.lane.b32.xlu0 %v681, 24
    %v2016 = vpop.permute.xlu0 %2015
    %2017 = vrot.lane.b32.xlu0 %v683, 24
    %v2018 = vpop.permute.xlu0 %2017
    %2019 = vrot.lane.b32.xlu0 %v686, 24
    %v2020 = vpop.permute.xlu0 %2019
    %2021 = vrot.lane.b32.xlu0 %v688, 24
    %v2022 = vpop.permute.xlu0 %2021
    %2023 = vrot.lane.b32.xlu0 %v691, 24
    %v2024 = vpop.permute.xlu0 %2023
    %2025 = vrot.lane.b32.xlu0 %v693, 24
    %v2026 = vpop.permute.xlu0 %2025
    %2027 = vrot.lane.b32.xlu0 %v696, 24
    %v2028 = vpop.permute.xlu0 %2027
    %2029 = vrot.lane.b32.xlu0 %v698, 24
    %v2030 = vpop.permute.xlu0 %2029
    %2031 = vrot.lane.b32.xlu0 %v701, 24
    %v2032 = vpop.permute.xlu0 %2031
    %2033 = vrot.lane.b32.xlu0 %v703, 24
    %v2034 = vpop.permute.xlu0 %2033
    %2035 = vrot.lane.b32.xlu0 %v706, 24
    %v2036 = vpop.permute.xlu0 %2035
    %2037 = vrot.lane.b32.xlu0 %v708, 24
    %v2038 = vpop.permute.xlu0 %2037
    %2039 = vrot.lane.b32.xlu0 %v711, 24
    %v2040 = vpop.permute.xlu0 %2039
    %2041 = vrot.lane.b32.xlu0 %v713, 24
    %v2042 = vpop.permute.xlu0 %2041
    %2043 = vrot.lane.b32.xlu0 %v716, 24
    %v2044 = vpop.permute.xlu0 %2043
    %2045 = vrot.lane.b32.xlu0 %v718, 24
    %v2046 = vpop.permute.xlu0 %2045
    %2047 = vrot.lane.b32.xlu0 %v721, 24
    %v2048 = vpop.permute.xlu0 %2047
    %2049 = vrot.lane.b32.xlu0 %v723, 24
    %v2050 = vpop.permute.xlu0 %2049
    %2051 = vrot.lane.b32.xlu0 %v726, 24
    %v2052 = vpop.permute.xlu0 %2051
    %2053 = vrot.lane.b32.xlu0 %v728, 24
    %v2054 = vpop.permute.xlu0 %2053
    %2055 = vrot.lane.b32.xlu0 %v731, 24
    %v2056 = vpop.permute.xlu0 %2055
    %2057 = vrot.lane.b32.xlu0 %v733, 24
    %v2058 = vpop.permute.xlu0 %2057
    %2059 = vrot.lane.b32.xlu0 %v736, 24
    %v2060 = vpop.permute.xlu0 %2059
    %2061 = vrot.lane.b32.xlu0 %v738, 24
    %v2062 = vpop.permute.xlu0 %2061
    %2063 = vrot.lane.b32.xlu0 %v1338, 24
    %v2064 = vpop.permute.xlu0 %2063
    %2065 = vrot.lane.b32.xlu0 %v1340, 24
    %v2066 = vpop.permute.xlu0 %2065
    %2067 = vrot.lane.b32.xlu0 %v1940, 24
    %v2068 = vpop.permute.xlu0 %2067
    %2069 = vrot.lane.b32.xlu0 %v1942, 24
    %v2070 = vpop.permute.xlu0 %2069
    %vm2135 = vcmask 23552
    %v2136 = vsel %vm2135, %v21, %v387
    %v2137 = vsel %vm2135, %v22, %v389
    %v2138 = vsel %vm2135, %v24, %v391
    %v2139 = vsel %vm2135, %v25, %v393
    %v2140 = vsel %vm2135, %v27, %v395
    %v2141 = vsel %vm2135, %v28, %v397
    %v2142 = vsel %vm2135, %v30, %v399
    %v2143 = vsel %vm2135, %v31, %v401
    %v2144 = vsel %vm2135, %v33, %v403
    %v2145 = vsel %vm2135, %v34, %v405
    %v2146 = vsel %vm2135, %v36, %v407
    %v2147 = vsel %vm2135, %v37, %v409
    %v2148 = vsel %vm2135, %v39, %v411
    %v2149 = vsel %vm2135, %v40, %v413
    %v2150 = vsel %vm2135, %v42, %v415
    %v2151 = vsel %vm2135, %v43, %v417
    %v2152 = vsel %vm2135, %v45, %v419
    %v2153 = vsel %vm2135, %v46, %v421
    %v2154 = vsel %vm2135, %v48, %v423
    %v2155 = vsel %vm2135, %v49, %v425
    %v2156 = vsel %vm2135, %v51, %v427
    %v2157 = vsel %vm2135, %v52, %v429
    %v2158 = vsel %vm2135, %v54, %v431
    %v2159 = vsel %vm2135, %v55, %v433
    %v2160 = vsel %vm2135, %v57, %v435
    %v2161 = vsel %vm2135, %v58, %v437
    %v2162 = vsel %vm2135, %v60, %v439
    %v2163 = vsel %vm2135, %v61, %v441
    %v2164 = vsel %vm2135, %v63, %v443
    %v2165 = vsel %vm2135, %v64, %v445
    %v2166 = vsel %vm2135, %v66, %v447
    %v2167 = vsel %vm2135, %v67, %v449
    %v2168 = vsel %vm2135, %v75, %v451
    %v2169 = vsel %vm2135, %v76, %v453
    %v2170 = vsel %vm2135, %v78, %v455
    %v2171 = vsel %vm2135, %v79, %v457
    %v2172 = vsel %vm2135, %v81, %v459
    %v2173 = vsel %vm2135, %v82, %v461
    %v2174 = vsel %vm2135, %v84, %v463
    %v2175 = vsel %vm2135, %v85, %v465
    %v2176 = vsel %vm2135, %v87, %v467
    %v2177 = vsel %vm2135, %v88, %v469
    %v2178 = vsel %vm2135, %v90, %v471
    %v2179 = vsel %vm2135, %v91, %v473
    %v2180 = vsel %vm2135, %v93, %v475
    %v2181 = vsel %vm2135, %v94, %v477
    %v2182 = vsel %vm2135, %v96, %v479
    %v2183 = vsel %vm2135, %v97, %v481
    %v2184 = vsel %vm2135, %v99, %v483
    %v2185 = vsel %vm2135, %v100, %v485
    %v2186 = vsel %vm2135, %v102, %v487
    %v2187 = vsel %vm2135, %v103, %v489
    %v2188 = vsel %vm2135, %v105, %v491
    %v2189 = vsel %vm2135, %v106, %v493
    %v2190 = vsel %vm2135, %v108, %v495
    %v2191 = vsel %vm2135, %v109, %v497
    %v2192 = vsel %vm2135, %v111, %v499
    %v2193 = vsel %vm2135, %v112, %v501
    %v2194 = vsel %vm2135, %v114, %v503
    %v2195 = vsel %vm2135, %v115, %v505
    %v2196 = vsel %vm2135, %v117, %v507
    %v2197 = vsel %vm2135, %v118, %v509
    %v2198 = vsel %vm2135, %v120, %v511
    %v2199 = vsel %vm2135, %v121, %v513
    %vm2200 = vcmask 48128
    %v2201 = vsel %vm2200, %v2136, %v740
    %v2202 = vsel %vm2200, %v2137, %v742
    %v2203 = vsel %vm2200, %v2138, %v744
    %v2204 = vsel %vm2200, %v2139, %v746
    %v2205 = vsel %vm2200, %v2140, %v748
    %v2206 = vsel %vm2200, %v2141, %v750
    %v2207 = vsel %vm2200, %v2142, %v752
    %v2208 = vsel %vm2200, %v2143, %v754
    %v2209 = vsel %vm2200, %v2144, %v756
    %v2210 = vsel %vm2200, %v2145, %v758
    %v2211 = vsel %vm2200, %v2146, %v760
    %v2212 = vsel %vm2200, %v2147, %v762
    %v2213 = vsel %vm2200, %v2148, %v764
    %v2214 = vsel %vm2200, %v2149, %v766
    %v2215 = vsel %vm2200, %v2150, %v768
    %v2216 = vsel %vm2200, %v2151, %v770
    %v2217 = vsel %vm2200, %v2152, %v772
    %v2218 = vsel %vm2200, %v2153, %v774
    %v2219 = vsel %vm2200, %v2154, %v776
    %v2220 = vsel %vm2200, %v2155, %v778
    %v2221 = vsel %vm2200, %v2156, %v780
    %v2222 = vsel %vm2200, %v2157, %v782
    %v2223 = vsel %vm2200, %v2158, %v784
    %v2224 = vsel %vm2200, %v2159, %v786
    %v2225 = vsel %vm2200, %v2160, %v788
    %v2226 = vsel %vm2200, %v2161, %v790
    %v2227 = vsel %vm2200, %v2162, %v792
    %v2228 = vsel %vm2200, %v2163, %v794
    %v2229 = vsel %vm2200, %v2164, %v796
    %v2230 = vsel %vm2200, %v2165, %v798
    %v2231 = vsel %vm2200, %v2166, %v800
    %v2232 = vsel %vm2200, %v2167, %v802
    %v2233 = vsel %vm2200, %v2168, %v804
    %v2234 = vsel %vm2200, %v2169, %v806
    %v2235 = vsel %vm2200, %v2170, %v808
    %v2236 = vsel %vm2200, %v2171, %v810
    %v2237 = vsel %vm2200, %v2172, %v812
    %v2238 = vsel %vm2200, %v2173, %v814
    %v2239 = vsel %vm2200, %v2174, %v816
    %v2240 = vsel %vm2200, %v2175, %v818
    %v2241 = vsel %vm2200, %v2176, %v820
    %v2242 = vsel %vm2200, %v2177, %v822
    %v2243 = vsel %vm2200, %v2178, %v824
    %v2244 = vsel %vm2200, %v2179, %v826
    %v2245 = vsel %vm2200, %v2180, %v828
    %v2246 = vsel %vm2200, %v2181, %v830
    %v2247 = vsel %vm2200, %v2182, %v832
    %v2248 = vsel %vm2200, %v2183, %v834
    %v2249 = vsel %vm2200, %v2184, %v836
    %v2250 = vsel %vm2200, %v2185, %v838
    %v2251 = vsel %vm2200, %v2186, %v840
    %v2252 = vsel %vm2200, %v2187, %v842
    %v2253 = vsel %vm2200, %v2188, %v844
    %v2254 = vsel %vm2200, %v2189, %v846
    %v2255 = vsel %vm2200, %v2190, %v848
    %v2256 = vsel %vm2200, %v2191, %v850
    %v2257 = vsel %vm2200, %v2192, %v852
    %v2258 = vsel %vm2200, %v2193, %v854
    %v2259 = vsel %vm2200, %v2194, %v856
    %v2260 = vsel %vm2200, %v2195, %v858
    %v2261 = vsel %vm2200, %v2196, %v860
    %v2262 = vsel %vm2200, %v2197, %v862
    %v2263 = vsel %vm2200, %v2198, %v864
    %v2264 = vsel %vm2200, %v2199, %v866
    %vm2265 = vcmask 72704
    %v2266 = vsel %vm2265, %v2201, %v936
    %v2267 = vsel %vm2265, %v2202, %v938
    %v2268 = vsel %vm2265, %v2203, %v940
    %v2269 = vsel %vm2265, %v2204, %v942
    %v2270 = vsel %vm2265, %v2205, %v944
    %v2271 = vsel %vm2265, %v2206, %v946
    %v2272 = vsel %vm2265, %v2207, %v948
    %v2273 = vsel %vm2265, %v2208, %v950
    %v2274 = vsel %vm2265, %v2209, %v952
    %v2275 = vsel %vm2265, %v2210, %v954
    %v2276 = vsel %vm2265, %v2211, %v956
    %v2277 = vsel %vm2265, %v2212, %v958
    %v2278 = vsel %vm2265, %v2213, %v960
    %v2279 = vsel %vm2265, %v2214, %v962
    %v2280 = vsel %vm2265, %v2215, %v964
    %v2281 = vsel %vm2265, %v2216, %v966
    %v2282 = vsel %vm2265, %v2217, %v968
    %v2283 = vsel %vm2265, %v2218, %v970
    %v2284 = vsel %vm2265, %v2219, %v972
    %v2285 = vsel %vm2265, %v2220, %v974
    %v2286 = vsel %vm2265, %v2221, %v976
    %v2287 = vsel %vm2265, %v2222, %v978
    %v2288 = vsel %vm2265, %v2223, %v980
    %v2289 = vsel %vm2265, %v2224, %v982
    %v2290 = vsel %vm2265, %v2225, %v984
    %v2291 = vsel %vm2265, %v2226, %v986
    %v2292 = vsel %vm2265, %v2227, %v988
    %v2293 = vsel %vm2265, %v2228, %v990
    %v2294 = vsel %vm2265, %v2229, %v992
    %v2295 = vsel %vm2265, %v2230, %v994
    %v2296 = vsel %vm2265, %v2231, %v996
    %v2297 = vsel %vm2265, %v2232, %v998
    %v2298 = vsel %vm2265, %v2233, %v1000
    %v2299 = vsel %vm2265, %v2234, %v1002
    %v2300 = vsel %vm2265, %v2235, %v1004
    %v2301 = vsel %vm2265, %v2236, %v1006
    %v2302 = vsel %vm2265, %v2237, %v1008
    %v2303 = vsel %vm2265, %v2238, %v1010
    %v2304 = vsel %vm2265, %v2239, %v1012
    %v2305 = vsel %vm2265, %v2240, %v1014
    %v2306 = vsel %vm2265, %v2241, %v1016
    %v2307 = vsel %vm2265, %v2242, %v1018
    %v2308 = vsel %vm2265, %v2243, %v1020
    %v2309 = vsel %vm2265, %v2244, %v1022
    %v2310 = vsel %vm2265, %v2245, %v1024
    %v2311 = vsel %vm2265, %v2246, %v1026
    %v2312 = vsel %vm2265, %v2247, %v1028
    %v2313 = vsel %vm2265, %v2248, %v1030
    %v2314 = vsel %vm2265, %v2249, %v1032
    %v2315 = vsel %vm2265, %v2250, %v1034
    %v2316 = vsel %vm2265, %v2251, %v1036
    %v2317 = vsel %vm2265, %v2252, %v1038
    %v2318 = vsel %vm2265, %v2253, %v1040
    %v2319 = vsel %vm2265, %v2254, %v1042
    %v2320 = vsel %vm2265, %v2255, %v1044
    %v2321 = vsel %vm2265, %v2256, %v1046
    %v2322 = vsel %vm2265, %v2257, %v1048
    %v2323 = vsel %vm2265, %v2258, %v1050
    %v2324 = vsel %vm2265, %v2259, %v1052
    %v2325 = vsel %vm2265, %v2260, %v1054
    %v2326 = vsel %vm2265, %v2261, %v1056
    %v2327 = vsel %vm2265, %v2262, %v1058
    %v2328 = vsel %vm2265, %v2263, %v1060
    %v2329 = vsel %vm2265, %v2264, %v1062
    %vm2330 = vcmask 97280
    %v2331 = vsel %vm2330, %v2266, %v1140
    %v2332 = vsel %vm2330, %v2267, %v1142
    %v2333 = vsel %vm2330, %v2268, %v1144
    %v2334 = vsel %vm2330, %v2269, %v1146
    %v2335 = vsel %vm2330, %v2270, %v1148
    %v2336 = vsel %vm2330, %v2271, %v1150
    %v2337 = vsel %vm2330, %v2272, %v1152
    %v2338 = vsel %vm2330, %v2273, %v1154
    %v2339 = vsel %vm2330, %v2274, %v1156
    %v2340 = vsel %vm2330, %v2275, %v1158
    %v2341 = vsel %vm2330, %v2276, %v1160
    %v2342 = vsel %vm2330, %v2277, %v1162
    %v2343 = vsel %vm2330, %v2278, %v1164
    %v2344 = vsel %vm2330, %v2279, %v1166
    %v2345 = vsel %vm2330, %v2280, %v1168
    %v2346 = vsel %vm2330, %v2281, %v1170
    %v2347 = vsel %vm2330, %v2282, %v1172
    %v2348 = vsel %vm2330, %v2283, %v1174
    %v2349 = vsel %vm2330, %v2284, %v1176
    %v2350 = vsel %vm2330, %v2285, %v1178
    %v2351 = vsel %vm2330, %v2286, %v1180
    %v2352 = vsel %vm2330, %v2287, %v1182
    %v2353 = vsel %vm2330, %v2288, %v1184
    %v2354 = vsel %vm2330, %v2289, %v1186
    %v2355 = vsel %vm2330, %v2290, %v1188
    %v2356 = vsel %vm2330, %v2291, %v1190
    %v2357 = vsel %vm2330, %v2292, %v1192
    %v2358 = vsel %vm2330, %v2293, %v1194
    %v2359 = vsel %vm2330, %v2294, %v1196
    %v2360 = vsel %vm2330, %v2295, %v1198
    %v2361 = vsel %vm2330, %v2296, %v1200
    %v2362 = vsel %vm2330, %v2297, %v1202
    %v2363 = vsel %vm2330, %v2298, %v1204
    %v2364 = vsel %vm2330, %v2299, %v1206
    %v2365 = vsel %vm2330, %v2300, %v1208
    %v2366 = vsel %vm2330, %v2301, %v1210
    %v2367 = vsel %vm2330, %v2302, %v1212
    %v2368 = vsel %vm2330, %v2303, %v1214
    %v2369 = vsel %vm2330, %v2304, %v1216
    %v2370 = vsel %vm2330, %v2305, %v1218
    %v2371 = vsel %vm2330, %v2306, %v1220
    %v2372 = vsel %vm2330, %v2307, %v1222
    %v2373 = vsel %vm2330, %v2308, %v1224
    %v2374 = vsel %vm2330, %v2309, %v1226
    %v2375 = vsel %vm2330, %v2310, %v1228
    %v2376 = vsel %vm2330, %v2311, %v1230
    %v2377 = vsel %vm2330, %v2312, %v1232
    %v2378 = vsel %vm2330, %v2313, %v1234
    %v2379 = vsel %vm2330, %v2314, %v1236
    %v2380 = vsel %vm2330, %v2315, %v1238
    %v2381 = vsel %vm2330, %v2316, %v1240
    %v2382 = vsel %vm2330, %v2317, %v1242
    %v2383 = vsel %vm2330, %v2318, %v1244
    %v2384 = vsel %vm2330, %v2319, %v1246
    %v2385 = vsel %vm2330, %v2320, %v1248
    %v2386 = vsel %vm2330, %v2321, %v1250
    %v2387 = vsel %vm2330, %v2322, %v1252
    %v2388 = vsel %vm2330, %v2323, %v1254
    %v2389 = vsel %vm2330, %v2324, %v1256
    %v2390 = vsel %vm2330, %v2325, %v1258
    %v2391 = vsel %vm2330, %v2326, %v1260
    %v2392 = vsel %vm2330, %v2327, %v1262
    %v2393 = vsel %vm2330, %v2328, %v1264
    %v2394 = vsel %vm2330, %v2329, %v1266
    %vm2395 = vcmask 121856
    %v2396 = vsel %vm2395, %v2331, %v1342
    %v2397 = vsel %vm2395, %v2332, %v1344
    %v2398 = vsel %vm2395, %v2333, %v1346
    %v2399 = vsel %vm2395, %v2334, %v1348
    %v2400 = vsel %vm2395, %v2335, %v1350
    %v2401 = vsel %vm2395, %v2336, %v1352
    %v2402 = vsel %vm2395, %v2337, %v1354
    %v2403 = vsel %vm2395, %v2338, %v1356
    %v2404 = vsel %vm2395, %v2339, %v1358
    %v2405 = vsel %vm2395, %v2340, %v1360
    %v2406 = vsel %vm2395, %v2341, %v1362
    %v2407 = vsel %vm2395, %v2342, %v1364
    %v2408 = vsel %vm2395, %v2343, %v1366
    %v2409 = vsel %vm2395, %v2344, %v1368
    %v2410 = vsel %vm2395, %v2345, %v1370
    %v2411 = vsel %vm2395, %v2346, %v1372
    %v2412 = vsel %vm2395, %v2347, %v1374
    %v2413 = vsel %vm2395, %v2348, %v1376
    %v2414 = vsel %vm2395, %v2349, %v1378
    %v2415 = vsel %vm2395, %v2350, %v1380
    %v2416 = vsel %vm2395, %v2351, %v1382
    %v2417 = vsel %vm2395, %v2352, %v1384
    %v2418 = vsel %vm2395, %v2353, %v1386
    %v2419 = vsel %vm2395, %v2354, %v1388
    %v2420 = vsel %vm2395, %v2355, %v1390
    %v2421 = vsel %vm2395, %v2356, %v1392
    %v2422 = vsel %vm2395, %v2357, %v1394
    %v2423 = vsel %vm2395, %v2358, %v1396
    %v2424 = vsel %vm2395, %v2359, %v1398
    %v2425 = vsel %vm2395, %v2360, %v1400
    %v2426 = vsel %vm2395, %v2361, %v1402
    %v2427 = vsel %vm2395, %v2362, %v1404
    %v2428 = vsel %vm2395, %v2363, %v1406
    %v2429 = vsel %vm2395, %v2364, %v1408
    %v2430 = vsel %vm2395, %v2365, %v1410
    %v2431 = vsel %vm2395, %v2366, %v1412
    %v2432 = vsel %vm2395, %v2367, %v1414
    %v2433 = vsel %vm2395, %v2368, %v1416
    %v2434 = vsel %vm2395, %v2369, %v1418
    %v2435 = vsel %vm2395, %v2370, %v1420
    %v2436 = vsel %vm2395, %v2371, %v1422
    %v2437 = vsel %vm2395, %v2372, %v1424
    %v2438 = vsel %vm2395, %v2373, %v1426
    %v2439 = vsel %vm2395, %v2374, %v1428
    %v2440 = vsel %vm2395, %v2375, %v1430
    %v2441 = vsel %vm2395, %v2376, %v1432
    %v2442 = vsel %vm2395, %v2377, %v1434
    %v2443 = vsel %vm2395, %v2378, %v1436
    %v2444 = vsel %vm2395, %v2379, %v1438
    %v2445 = vsel %vm2395, %v2380, %v1440
    %v2446 = vsel %vm2395, %v2381, %v1442
    %v2447 = vsel %vm2395, %v2382, %v1444
    %v2448 = vsel %vm2395, %v2383, %v1446
    %v2449 = vsel %vm2395, %v2384, %v1448
    %v2450 = vsel %vm2395, %v2385, %v1450
    %v2451 = vsel %vm2395, %v2386, %v1452
    %v2452 = vsel %vm2395, %v2387, %v1454
    %v2453 = vsel %vm2395, %v2388, %v1456
    %v2454 = vsel %vm2395, %v2389, %v1458
    %v2455 = vsel %vm2395, %v2390, %v1460
    %v2456 = vsel %vm2395, %v2391, %v1462
    %v2457 = vsel %vm2395, %v2392, %v1464
    %v2458 = vsel %vm2395, %v2393, %v1466
    %v2459 = vsel %vm2395, %v2394, %v1468
    %vm2460 = vcmask 146432
    %v2461 = vsel %vm2460, %v2396, %v1538
    %v2462 = vsel %vm2460, %v2397, %v1540
    %v2463 = vsel %vm2460, %v2398, %v1542
    %v2464 = vsel %vm2460, %v2399, %v1544
    %v2465 = vsel %vm2460, %v2400, %v1546
    %v2466 = vsel %vm2460, %v2401, %v1548
    %v2467 = vsel %vm2460, %v2402, %v1550
    %v2468 = vsel %vm2460, %v2403, %v1552
    %v2469 = vsel %vm2460, %v2404, %v1554
    %v2470 = vsel %vm2460, %v2405, %v1556
    %v2471 = vsel %vm2460, %v2406, %v1558
    %v2472 = vsel %vm2460, %v2407, %v1560
    %v2473 = vsel %vm2460, %v2408, %v1562
    %v2474 = vsel %vm2460, %v2409, %v1564
    %v2475 = vsel %vm2460, %v2410, %v1566
    %v2476 = vsel %vm2460, %v2411, %v1568
    %v2477 = vsel %vm2460, %v2412, %v1570
    %v2478 = vsel %vm2460, %v2413, %v1572
    %v2479 = vsel %vm2460, %v2414, %v1574
    %v2480 = vsel %vm2460, %v2415, %v1576
    %v2481 = vsel %vm2460, %v2416, %v1578
    %v2482 = vsel %vm2460, %v2417, %v1580
    %v2483 = vsel %vm2460, %v2418, %v1582
    %v2484 = vsel %vm2460, %v2419, %v1584
    %v2485 = vsel %vm2460, %v2420, %v1586
    %v2486 = vsel %vm2460, %v2421, %v1588
    %v2487 = vsel %vm2460, %v2422, %v1590
    %v2488 = vsel %vm2460, %v2423, %v1592
    %v2489 = vsel %vm2460, %v2424, %v1594
    %v2490 = vsel %vm2460, %v2425, %v1596
    %v2491 = vsel %vm2460, %v2426, %v1598
    %v2492 = vsel %vm2460, %v2427, %v1600
    %v2493 = vsel %vm2460, %v2428, %v1602
    %v2494 = vsel %vm2460, %v2429, %v1604
    %v2495 = vsel %vm2460, %v2430, %v1606
    %v2496 = vsel %vm2460, %v2431, %v1608
    %v2497 = vsel %vm2460, %v2432, %v1610
    %v2498 = vsel %vm2460, %v2433, %v1612
    %v2499 = vsel %vm2460, %v2434, %v1614
    %v2500 = vsel %vm2460, %v2435, %v1616
    %v2501 = vsel %vm2460, %v2436, %v1618
    %v2502 = vsel %vm2460, %v2437, %v1620
    %v2503 = vsel %vm2460, %v2438, %v1622
    %v2504 = vsel %vm2460, %v2439, %v1624
    %v2505 = vsel %vm2460, %v2440, %v1626
    %v2506 = vsel %vm2460, %v2441, %v1628
    %v2507 = vsel %vm2460, %v2442, %v1630
    %v2508 = vsel %vm2460, %v2443, %v1632
    %v2509 = vsel %vm2460, %v2444, %v1634
    %v2510 = vsel %vm2460, %v2445, %v1636
    %v2511 = vsel %vm2460, %v2446, %v1638
    %v2512 = vsel %vm2460, %v2447, %v1640
    %v2513 = vsel %vm2460, %v2448, %v1642
    %v2514 = vsel %vm2460, %v2449, %v1644
    %v2515 = vsel %vm2460, %v2450, %v1646
    %v2516 = vsel %vm2460, %v2451, %v1648
    %v2517 = vsel %vm2460, %v2452, %v1650
    %v2518 = vsel %vm2460, %v2453, %v1652
    %v2519 = vsel %vm2460, %v2454, %v1654
    %v2520 = vsel %vm2460, %v2455, %v1656
    %v2521 = vsel %vm2460, %v2456, %v1658
    %v2522 = vsel %vm2460, %v2457, %v1660
    %v2523 = vsel %vm2460, %v2458, %v1662
    %v2524 = vsel %vm2460, %v2459, %v1664
    %vm2525 = vcmask 171008
    %v2526 = vsel %vm2525, %v2461, %v1742
    %v2527 = vsel %vm2525, %v2462, %v1744
    %v2528 = vsel %vm2525, %v2463, %v1746
    %v2529 = vsel %vm2525, %v2464, %v1748
    %v2530 = vsel %vm2525, %v2465, %v1750
    %v2531 = vsel %vm2525, %v2466, %v1752
    %v2532 = vsel %vm2525, %v2467, %v1754
    %v2533 = vsel %vm2525, %v2468, %v1756
    %v2534 = vsel %vm2525, %v2469, %v1758
    %v2535 = vsel %vm2525, %v2470, %v1760
    %v2536 = vsel %vm2525, %v2471, %v1762
    %v2537 = vsel %vm2525, %v2472, %v1764
    %v2538 = vsel %vm2525, %v2473, %v1766
    %v2539 = vsel %vm2525, %v2474, %v1768
    %v2540 = vsel %vm2525, %v2475, %v1770
    %v2541 = vsel %vm2525, %v2476, %v1772
    %v2542 = vsel %vm2525, %v2477, %v1774
    %v2543 = vsel %vm2525, %v2478, %v1776
    %v2544 = vsel %vm2525, %v2479, %v1778
    %v2545 = vsel %vm2525, %v2480, %v1780
    %v2546 = vsel %vm2525, %v2481, %v1782
    %v2547 = vsel %vm2525, %v2482, %v1784
    %v2548 = vsel %vm2525, %v2483, %v1786
    %v2549 = vsel %vm2525, %v2484, %v1788
    %v2550 = vsel %vm2525, %v2485, %v1790
    %v2551 = vsel %vm2525, %v2486, %v1792
    %v2552 = vsel %vm2525, %v2487, %v1794
    %v2553 = vsel %vm2525, %v2488, %v1796
    %v2554 = vsel %vm2525, %v2489, %v1798
    %v2555 = vsel %vm2525, %v2490, %v1800
    %v2556 = vsel %vm2525, %v2491, %v1802
    %v2557 = vsel %vm2525, %v2492, %v1804
    %v2558 = vsel %vm2525, %v2493, %v1806
    %v2559 = vsel %vm2525, %v2494, %v1808
    %v2560 = vsel %vm2525, %v2495, %v1810
    %v2561 = vsel %vm2525, %v2496, %v1812
    %v2562 = vsel %vm2525, %v2497, %v1814
    %v2563 = vsel %vm2525, %v2498, %v1816
    %v2564 = vsel %vm2525, %v2499, %v1818
    %v2565 = vsel %vm2525, %v2500, %v1820
    %v2566 = vsel %vm2525, %v2501, %v1822
    %v2567 = vsel %vm2525, %v2502, %v1824
    %v2568 = vsel %vm2525, %v2503, %v1826
    %v2569 = vsel %vm2525, %v2504, %v1828
    %v2570 = vsel %vm2525, %v2505, %v1830
    %v2571 = vsel %vm2525, %v2506, %v1832
    %v2572 = vsel %vm2525, %v2507, %v1834
    %v2573 = vsel %vm2525, %v2508, %v1836
    %v2574 = vsel %vm2525, %v2509, %v1838
    %v2575 = vsel %vm2525, %v2510, %v1840
    %v2576 = vsel %vm2525, %v2511, %v1842
    %v2577 = vsel %vm2525, %v2512, %v1844
    %v2578 = vsel %vm2525, %v2513, %v1846
    %v2579 = vsel %vm2525, %v2514, %v1848
    %v2580 = vsel %vm2525, %v2515, %v1850
    %v2581 = vsel %vm2525, %v2516, %v1852
    %v2582 = vsel %vm2525, %v2517, %v1854
    %v2583 = vsel %vm2525, %v2518, %v1856
    %v2584 = vsel %vm2525, %v2519, %v1858
    %v2585 = vsel %vm2525, %v2520, %v1860
    %v2586 = vsel %vm2525, %v2521, %v1862
    %v2587 = vsel %vm2525, %v2522, %v1864
    %v2588 = vsel %vm2525, %v2523, %v1866
    %v2589 = vsel %vm2525, %v2524, %v1868
    %vm2590 = vcmask 195584
    %v2591 = vsel %vm2590, %v2526, %v1944
    %v2592 = vsel %vm2590, %v2527, %v1946
    %v2593 = vsel %vm2590, %v2528, %v1948
    %v2594 = vsel %vm2590, %v2529, %v1950
    %v2595 = vsel %vm2590, %v2530, %v1952
    %v2596 = vsel %vm2590, %v2531, %v1954
    %v2597 = vsel %vm2590, %v2532, %v1956
    %v2598 = vsel %vm2590, %v2533, %v1958
    %v2599 = vsel %vm2590, %v2534, %v1960
    %v2600 = vsel %vm2590, %v2535, %v1962
    %v2601 = vsel %vm2590, %v2536, %v1964
    %v2602 = vsel %vm2590, %v2537, %v1966
    %v2603 = vsel %vm2590, %v2538, %v1968
    %v2604 = vsel %vm2590, %v2539, %v1970
    %v2605 = vsel %vm2590, %v2540, %v1972
    %v2606 = vsel %vm2590, %v2541, %v1974
    %v2607 = vsel %vm2590, %v2542, %v1976
    %v2608 = vsel %vm2590, %v2543, %v1978
    %v2609 = vsel %vm2590, %v2544, %v1980
    %v2610 = vsel %vm2590, %v2545, %v1982
    %v2611 = vsel %vm2590, %v2546, %v1984
    %v2612 = vsel %vm2590, %v2547, %v1986
    %v2613 = vsel %vm2590, %v2548, %v1988
    %v2614 = vsel %vm2590, %v2549, %v1990
    %v2615 = vsel %vm2590, %v2550, %v1992
    %v2616 = vsel %vm2590, %v2551, %v1994
    %v2617 = vsel %vm2590, %v2552, %v1996
    %v2618 = vsel %vm2590, %v2553, %v1998
    %v2619 = vsel %vm2590, %v2554, %v2000
    %v2620 = vsel %vm2590, %v2555, %v2002
    %v2621 = vsel %vm2590, %v2556, %v2004
    %v2622 = vsel %vm2590, %v2557, %v2006
    %v2623 = vsel %vm2590, %v2558, %v2008
    %v2624 = vsel %vm2590, %v2559, %v2010
    %v2625 = vsel %vm2590, %v2560, %v2012
    %v2626 = vsel %vm2590, %v2561, %v2014
    %v2627 = vsel %vm2590, %v2562, %v2016
    %v2628 = vsel %vm2590, %v2563, %v2018
    %v2629 = vsel %vm2590, %v2564, %v2020
    %v2630 = vsel %vm2590, %v2565, %v2022
    %v2631 = vsel %vm2590, %v2566, %v2024
    %v2632 = vsel %vm2590, %v2567, %v2026
    %v2633 = vsel %vm2590, %v2568, %v2028
    %v2634 = vsel %vm2590, %v2569, %v2030
    %v2635 = vsel %vm2590, %v2570, %v2032
    %v2636 = vsel %vm2590, %v2571, %v2034
    %v2637 = vsel %vm2590, %v2572, %v2036
    %v2638 = vsel %vm2590, %v2573, %v2038
    %v2639 = vsel %vm2590, %v2574, %v2040
    %v2640 = vsel %vm2590, %v2575, %v2042
    %v2641 = vsel %vm2590, %v2576, %v2044
    %v2642 = vsel %vm2590, %v2577, %v2046
    %v2643 = vsel %vm2590, %v2578, %v2048
    %v2644 = vsel %vm2590, %v2579, %v2050
    %v2645 = vsel %vm2590, %v2580, %v2052
    %v2646 = vsel %vm2590, %v2581, %v2054
    %v2647 = vsel %vm2590, %v2582, %v2056
    %v2648 = vsel %vm2590, %v2583, %v2058
    %v2649 = vsel %vm2590, %v2584, %v2060
    %v2650 = vsel %vm2590, %v2585, %v2062
    %v2651 = vsel %vm2590, %v2586, %v2064
    %v2652 = vsel %vm2590, %v2587, %v2066
    %v2653 = vsel %vm2590, %v2588, %v2068
    %v2654 = vsel %vm2590, %v2589, %v2070
    %v2655 = vld [vmem:[%s1] sm:$0xff]
    %v2656 = vld [vmem:[%s1 + $0x8] sm:$0xff]
    %v2657 = vld [vmem:[%s1 + $0x10] sm:$0xff]
    %v2658 = vld [vmem:[%s1 + $0x18] sm:$0x7]
    %v2659 = vld [vmem:[%s2] sm:$0x1]
    %v2661 = vlaneseq
    %v2662 = vshrl.u32 %v2661, 7
    %v2663 = vsub.s32 0, %v2662
    %v2664 = vrot.slane %v2659, %v2663
    %vm2666 = vcmask 220160
    %v2668 = vsel %vm2666, %v2591, 0
    %v2671 = vsel %vm2666, %v2592, 0
    %v2674 = vsel %vm2666, %v2593, 0
    %v2677 = vsel %vm2666, %v2594, 0
    %v2680 = vsel %vm2666, %v2595, 0
    %v2683 = vsel %vm2666, %v2596, 0
    %v2686 = vsel %vm2666, %v2597, 0
    %v2689 = vsel %vm2666, %v2598, 0
    %v2692 = vsel %vm2666, %v2599, 0
    %v2695 = vsel %vm2666, %v2600, 0
    %v2698 = vsel %vm2666, %v2601, 0
    %v2701 = vsel %vm2666, %v2602, 0
    %v2704 = vsel %vm2666, %v2603, 0
    %v2707 = vsel %vm2666, %v2604, 0
    %v2710 = vsel %vm2666, %v2605, 0
    %v2713 = vsel %vm2666, %v2606, 0
    %v2716 = vsel %vm2666, %v2607, 0
    %v2719 = vsel %vm2666, %v2608, 0
    %v2722 = vsel %vm2666, %v2609, 0
    %v2725 = vsel %vm2666, %v2610, 0
    %v2728 = vsel %vm2666, %v2611, 0
    %v2731 = vsel %vm2666, %v2612, 0
    %v2734 = vsel %vm2666, %v2613, 0
    %v2737 = vsel %vm2666, %v2614, 0
    %v2740 = vsel %vm2666, %v2615, 0
    %v2743 = vsel %vm2666, %v2616, 0
    %v2746 = vsel %vm2666, %v2617, 0
    %v2749 = vsel %vm2666, %v2618, 0
    %v2752 = vsel %vm2666, %v2619, 0
    %v2755 = vsel %vm2666, %v2620, 0
    %v2758 = vsel %vm2666, %v2621, 0
    %v2761 = vsel %vm2666, %v2622, 0
    %v2764 = vsel %vm2666, %v2623, 0
    %v2767 = vsel %vm2666, %v2624, 0
    %v2770 = vsel %vm2666, %v2625, 0
    %v2773 = vsel %vm2666, %v2626, 0
    %v2776 = vsel %vm2666, %v2627, 0
    %v2779 = vsel %vm2666, %v2628, 0
    %v2782 = vsel %vm2666, %v2629, 0
    %v2785 = vsel %vm2666, %v2630, 0
    %v2788 = vsel %vm2666, %v2631, 0
    %v2791 = vsel %vm2666, %v2632, 0
    %v2794 = vsel %vm2666, %v2633, 0
    %v2797 = vsel %vm2666, %v2634, 0
    %v2800 = vsel %vm2666, %v2635, 0
    %v2803 = vsel %vm2666, %v2636, 0
    %v2806 = vsel %vm2666, %v2637, 0
    %v2809 = vsel %vm2666, %v2638, 0
    %v2812 = vsel %vm2666, %v2639, 0
    %v2815 = vsel %vm2666, %v2640, 0
    %v2818 = vsel %vm2666, %v2641, 0
    %v2821 = vsel %vm2666, %v2642, 0
    %v2824 = vsel %vm2666, %v2643, 0
    %v2827 = vsel %vm2666, %v2644, 0
    %v2830 = vsel %vm2666, %v2645, 0
    %v2833 = vsel %vm2666, %v2646, 0
    %v2836 = vsel %vm2666, %v2647, 0
    %v2839 = vsel %vm2666, %v2648, 0
    %v2842 = vsel %vm2666, %v2649, 0
    %v2845 = vsel %vm2666, %v2650, 0
    %v2848 = vsel %vm2666, %v2651, 0
    %v2851 = vsel %vm2666, %v2652, 0
    %v2854 = vsel %vm2666, %v2653, 0
    %v2857 = vsel %vm2666, %v2654, 0
    %vm2859 = vcmask 1042432
    %v2861 = vsel %vm2859, %v2658, 0
    %2863 = vmatprep.subr.mxu0 0.0
    %2864 = vmatpush1.msra.mxu0 %v2655
    %2865 = vmatprep.subr.mxu0 0.0
    %2866 = vmatpush1.msra.mxu0 %v2656
    %2867 = vmatprep.subr.mxu0 0.0
    %2868 = vmatpush1.msra.mxu0 %v2657
    %2869 = vmatprep.subr.mxu0 0.0
    %2870 = vmatpush1.msra.mxu0 %v2861
    %2871 = vmatprep.subr.mxu0 0.0
    %2872 = vmatpush1.msra.mxu0 0.0
    %2873 = vmatprep.subr.mxu0 0.0
    %2874 = vmatpush1.msra.mxu0 0.0
    %2875 = vmatprep.subr.mxu0 0.0
    %2876 = vmatpush1.msra.mxu0 0.0
    %2877 = vmatprep.subr.mxu0 0.0
    %2878 = vmatpush1.msra.mxu0 0.0
    %2879 = vmatprep.subr.mxu0 0.0
    %2880 = vmatpush1.msra.mxu0 0.0
    %2881 = vmatprep.subr.mxu0 0.0
    %2882 = vmatpush1.msra.mxu0 0.0
    %2883 = vmatprep.subr.mxu0 0.0
    %2884 = vmatpush1.msra.mxu0 0.0
    %2885 = vmatprep.subr.mxu0 0.0
    %2886 = vmatpush1.msra.mxu0 0.0
    %2887 = vmatprep.subr.mxu0 0.0
    %2888 = vmatpush1.msra.mxu0 0.0
    %2889 = vmatprep.subr.mxu0 0.0
    %2890 = vmatpush1.msra.mxu0 0.0
    %2891 = vmatprep.subr.mxu0 0.0
    %2892 = vmatpush1.msra.mxu0 0.0
    %2893 = vmatprep.subr.mxu0 0.0
    %2894 = vmatpush1.msra.mxu0 0.0
    %2895 = vmatprep.subr.mxu0 0.0
    %2896 = vmatpush1.msra.mxu0 0.0
    %2897 = vmatprep.subr.mxu0 0.0
    %2898 = vmatpush1.msra.mxu0 0.0
    %2899 = vmatprep.subr.mxu0 0.0
    %2900 = vmatpush1.msra.mxu0 0.0
    %2901 = vmatprep.subr.mxu0 0.0
    %2902 = vmatpush1.msra.mxu0 0.0
    %2903 = vmatprep.subr.mxu0 0.0
    %2904 = vmatpush1.msra.mxu0 0.0
    %2905 = vmatprep.subr.mxu0 0.0
    %2906 = vmatpush1.msra.mxu0 0.0
    %2907 = vmatprep.subr.mxu0 0.0
    %2908 = vmatpush1.msra.mxu0 0.0
    %2909 = vmatprep.subr.mxu0 0.0
    %2910 = vmatpush1.msra.mxu0 0.0
    %2911 = vmatprep.subr.mxu0 0.0
    %2912 = vmatpush1.msra.mxu0 0.0
    %2913 = vmatprep.subr.mxu0 0.0
    %2914 = vmatpush1.msra.mxu0 0.0
    %2915 = vmatprep.subr.mxu0 0.0
    %2916 = vmatpush1.msra.mxu0 0.0
    %2917 = vmatprep.subr.mxu0 0.0
    %2918 = vmatpush1.msra.mxu0 0.0
    %2919 = vmatprep.subr.mxu0 0.0
    %2920 = vmatpush1.msra.mxu0 0.0
    %2921 = vmatprep.subr.mxu0 0.0
    %2922 = vmatpush1.msra.mxu0 0.0
    %2923 = vmatprep.subr.mxu0 0.0
    %2924 = vmatpush1.msra.mxu0 0.0
    %2925 = vmatprep.subr.mxu0 0.0
    %2926 = vmatpush1.msra.mxu0 0.0
    %2927 = vmatprep.mubr.f32.mxu0 0.0
    %2928 = vmatmul.mubr.f32.gmra.mrb[0].mxu0 %v2668
    %v2929 = vpop.f32.mrb[0].mxu0
    %v2930 = vadd.f32 %v2664, %v2929
    %v2931 = vpop.f32.mrb[0].mxu0
    %2932 = vmatprep.mubr.f32.mxu0 0.0
    %2933 = vmatmul.mubr.f32.gmra.mrb[0].mxu0 %v2671
    %v2934 = vpop.f32.mrb[0].mxu0
    %v2935 = vadd.f32 %v2664, %v2934
    %v2936 = vpop.f32.mrb[0].mxu0
    %2937 = vmatprep.mubr.f32.mxu0 0.0
    %2938 = vmatmul.mubr.f32.gmra.mrb[0].mxu0 %v2674
    %v2939 = vpop.f32.mrb[0].mxu0
    %v2940 = vadd.f32 %v2664, %v2939
    %v2941 = vpop.f32.mrb[0].mxu0
    %2942 = vmatprep.mubr.f32.mxu0 0.0
    %2943 = vmatmul.mubr.f32.gmra.mrb[0].mxu0 %v2677
    %v2944 = vpop.f32.mrb[0].mxu0
    %v2945 = vadd.f32 %v2664, %v2944
    %v2946 = vpop.f32.mrb[0].mxu0
    %2947 = vmatprep.mubr.f32.mxu0 0.0
    %2948 = vmatmul.mubr.f32.gmra.mrb[0].mxu0 %v2680
    %v2949 = vpop.f32.mrb[0].mxu0
    %v2950 = vadd.f32 %v2664, %v2949
    %v2951 = vpop.f32.mrb[0].mxu0
    %2952 = vmatprep.mubr.f32.mxu0 0.0
    %2953 = vmatmul.mubr.f32.gmra.mrb[0].mxu0 %v2683
    %v2954 = vpop.f32.mrb[0].mxu0
    %v2955 = vadd.f32 %v2664, %v2954
    %v2956 = vpop.f32.mrb[0].mxu0
    %2957 = vmatprep.mubr.f32.mxu0 0.0
    %2958 = vmatmul.mubr.f32.gmra.mrb[0].mxu0 %v2686
    %v2959 = vpop.f32.mrb[0].mxu0
    %v2960 = vadd.f32 %v2664, %v2959
    %v2961 = vpop.f32.mrb[0].mxu0
    %2962 = vmatprep.mubr.f32.mxu0 0.0
    %2963 = vmatmul.mubr.f32.gmra.mrb[0].mxu0 %v2689
    %v2964 = vpop.f32.mrb[0].mxu0
    %v2965 = vadd.f32 %v2664, %v2964
    %v2966 = vpop.f32.mrb[0].mxu0
    %2967 = vmatprep.mubr.f32.mxu0 0.0
    %2968 = vmatmul.mubr.f32.gmra.mrb[0].mxu0 %v2692
    %v2969 = vpop.f32.mrb[0].mxu0
    %v2970 = vadd.f32 %v2664, %v2969
    %v2971 = vpop.f32.mrb[0].mxu0
    %2972 = vmatprep.mubr.f32.mxu0 0.0
    %2973 = vmatmul.mubr.f32.gmra.mrb[0].mxu0 %v2695
    %v2974 = vpop.f32.mrb[0].mxu0
    %v2975 = vadd.f32 %v2664, %v2974
    %v2976 = vpop.f32.mrb[0].mxu0
    %2977 = vmatprep.mubr.f32.mxu0 0.0
    %2978 = vmatmul.mubr.f32.gmra.mrb[0].mxu0 %v2698
    %v2979 = vpop.f32.mrb[0].mxu0
    %v2980 = vadd.f32 %v2664, %v2979
    %v2981 = vpop.f32.mrb[0].mxu0
    %2982 = vmatprep.mubr.f32.mxu0 0.0
    %2983 = vmatmul.mubr.f32.gmra.mrb[0].mxu0 %v2701
    %v2984 = vpop.f32.mrb[0].mxu0
    %v2985 = vadd.f32 %v2664, %v2984
    %v2986 = vpop.f32.mrb[0].mxu0
    %2987 = vmatprep.mubr.f32.mxu0 0.0
    %2988 = vmatmul.mubr.f32.gmra.mrb[0].mxu0 %v2704
    %v2989 = vpop.f32.mrb[0].mxu0
    %v2990 = vadd.f32 %v2664, %v2989
    %v2991 = vpop.f32.mrb[0].mxu0
    %2992 = vmatprep.mubr.f32.mxu0 0.0
    %2993 = vmatmul.mubr.f32.gmra.mrb[0].mxu0 %v2707
    %v2994 = vpop.f32.mrb[0].mxu0
    %v2995 = vadd.f32 %v2664, %v2994
    %v2996 = vpop.f32.mrb[0].mxu0
    %2997 = vmatprep.mubr.f32.mxu0 0.0
    %2998 = vmatmul.mubr.f32.gmra.mrb[0].mxu0 %v2710
    %v2999 = vpop.f32.mrb[0].mxu0
    %v3000 = vadd.f32 %v2664, %v2999
    %v3001 = vpop.f32.mrb[0].mxu0
    %3002 = vmatprep.mubr.f32.mxu0 0.0
    %3003 = vmatmul.mubr.f32.gmra.mrb[0].mxu0 %v2713
    %v3004 = vpop.f32.mrb[0].mxu0
    %v3005 = vadd.f32 %v2664, %v3004
    %v3006 = vpop.f32.mrb[0].mxu0
    %3007 = vmatprep.mubr.f32.mxu0 0.0
    %3008 = vmatmul.mubr.f32.gmra.mrb[0].mxu0 %v2716
    %v3009 = vpop.f32.mrb[0].mxu0
    %v3010 = vadd.f32 %v2664, %v3009
    %v3011 = vpop.f32.mrb[0].mxu0
    %3012 = vmatprep.mubr.f32.mxu0 0.0
    %3013 = vmatmul.mubr.f32.gmra.mrb[0].mxu0 %v2719
    %v3014 = vpop.f32.mrb[0].mxu0
    %v3015 = vadd.f32 %v2664, %v3014
    %v3016 = vpop.f32.mrb[0].mxu0
    %3017 = vmatprep.mubr.f32.mxu0 0.0
    %3018 = vmatmul.mubr.f32.gmra.mrb[0].mxu0 %v2722
    %v3019 = vpop.f32.mrb[0].mxu0
    %v3020 = vadd.f32 %v2664, %v3019
    %v3021 = vpop.f32.mrb[0].mxu0
    %3022 = vmatprep.mubr.f32.mxu0 0.0
    %3023 = vmatmul.mubr.f32.gmra.mrb[0].mxu0 %v2725
    %v3024 = vpop.f32.mrb[0].mxu0
    %v3025 = vadd.f32 %v2664, %v3024
    %v3026 = vpop.f32.mrb[0].mxu0
    %3027 = vmatprep.mubr.f32.mxu0 0.0
    %3028 = vmatmul.mubr.f32.gmra.mrb[0].mxu0 %v2728
    %v3029 = vpop.f32.mrb[0].mxu0
    %v3030 = vadd.f32 %v2664, %v3029
    %v3031 = vpop.f32.mrb[0].mxu0
    %3032 = vmatprep.mubr.f32.mxu0 0.0
    %3033 = vmatmul.mubr.f32.gmra.mrb[0].mxu0 %v2731
    %v3034 = vpop.f32.mrb[0].mxu0
    %v3035 = vadd.f32 %v2664, %v3034
    %v3036 = vpop.f32.mrb[0].mxu0
    %3037 = vmatprep.mubr.f32.mxu0 0.0
    %3038 = vmatmul.mubr.f32.gmra.mrb[0].mxu0 %v2734
    %v3039 = vpop.f32.mrb[0].mxu0
    %v3040 = vadd.f32 %v2664, %v3039
    %v3041 = vpop.f32.mrb[0].mxu0
    %3042 = vmatprep.mubr.f32.mxu0 0.0
    %3043 = vmatmul.mubr.f32.gmra.mrb[0].mxu0 %v2737
    %v3044 = vpop.f32.mrb[0].mxu0
    %v3045 = vadd.f32 %v2664, %v3044
    %v3046 = vpop.f32.mrb[0].mxu0
    %3047 = vmatprep.mubr.f32.mxu0 0.0
    %3048 = vmatmul.mubr.f32.gmra.mrb[0].mxu0 %v2740
    %v3049 = vpop.f32.mrb[0].mxu0
    %v3050 = vadd.f32 %v2664, %v3049
    %v3051 = vpop.f32.mrb[0].mxu0
    %3052 = vmatprep.mubr.f32.mxu0 0.0
    %3053 = vmatmul.mubr.f32.gmra.mrb[0].mxu0 %v2743
    %v3054 = vpop.f32.mrb[0].mxu0
    %v3055 = vadd.f32 %v2664, %v3054
    %v3056 = vpop.f32.mrb[0].mxu0
    %3057 = vmatprep.mubr.f32.mxu0 0.0
    %3058 = vmatmul.mubr.f32.gmra.mrb[0].mxu0 %v2746
    %v3059 = vpop.f32.mrb[0].mxu0
    %v3060 = vadd.f32 %v2664, %v3059
    %v3061 = vpop.f32.mrb[0].mxu0
    %3062 = vmatprep.mubr.f32.mxu0 0.0
    %3063 = vmatmul.mubr.f32.gmra.mrb[0].mxu0 %v2749
    %v3064 = vpop.f32.mrb[0].mxu0
    %v3065 = vadd.f32 %v2664, %v3064
    %v3066 = vpop.f32.mrb[0].mxu0
    %3067 = vmatprep.mubr.f32.mxu0 0.0
    %3068 = vmatmul.mubr.f32.gmra.mrb[0].mxu0 %v2752
    %v3069 = vpop.f32.mrb[0].mxu0
    %v3070 = vadd.f32 %v2664, %v3069
    %v3071 = vpop.f32.mrb[0].mxu0
    %3072 = vmatprep.mubr.f32.mxu0 0.0
    %3073 = vmatmul.mubr.f32.gmra.mrb[0].mxu0 %v2755
    %v3074 = vpop.f32.mrb[0].mxu0
    %v3075 = vadd.f32 %v2664, %v3074
    %v3076 = vpop.f32.mrb[0].mxu0
    %3077 = vmatprep.mubr.f32.mxu0 0.0
    %3078 = vmatmul.mubr.f32.gmra.mrb[0].mxu0 %v2758
    %v3079 = vpop.f32.mrb[0].mxu0
    %v3080 = vadd.f32 %v2664, %v3079
    %v3081 = vpop.f32.mrb[0].mxu0
    %3082 = vmatprep.mubr.f32.mxu0 0.0
    %3083 = vmatmul.mubr.f32.gmra.mrb[0].mxu0 %v2761
    %v3084 = vpop.f32.mrb[0].mxu0
    %v3085 = vadd.f32 %v2664, %v3084
    %v3086 = vpop.f32.mrb[0].mxu0
    %3087 = vmatprep.mubr.f32.mxu0 0.0
    %3088 = vmatmul.mubr.f32.gmra.mrb[0].mxu0 %v2764
    %v3089 = vpop.f32.mrb[0].mxu0
    %v3090 = vadd.f32 %v2664, %v3089
    %v3091 = vpop.f32.mrb[0].mxu0
    %3092 = vmatprep.mubr.f32.mxu0 0.0
    %3093 = vmatmul.mubr.f32.gmra.mrb[0].mxu0 %v2767
    %v3094 = vpop.f32.mrb[0].mxu0
    %v3095 = vadd.f32 %v2664, %v3094
    %v3096 = vpop.f32.mrb[0].mxu0
    %3097 = vmatprep.mubr.f32.mxu0 0.0
    %3098 = vmatmul.mubr.f32.gmra.mrb[0].mxu0 %v2770
    %v3099 = vpop.f32.mrb[0].mxu0
    %v3100 = vadd.f32 %v2664, %v3099
    %v3101 = vpop.f32.mrb[0].mxu0
    %3102 = vmatprep.mubr.f32.mxu0 0.0
    %3103 = vmatmul.mubr.f32.gmra.mrb[0].mxu0 %v2773
    %v3104 = vpop.f32.mrb[0].mxu0
    %v3105 = vadd.f32 %v2664, %v3104
    %v3106 = vpop.f32.mrb[0].mxu0
    %3107 = vmatprep.mubr.f32.mxu0 0.0
    %3108 = vmatmul.mubr.f32.gmra.mrb[0].mxu0 %v2776
    %v3109 = vpop.f32.mrb[0].mxu0
    %v3110 = vadd.f32 %v2664, %v3109
    %v3111 = vpop.f32.mrb[0].mxu0
    %3112 = vmatprep.mubr.f32.mxu0 0.0
    %3113 = vmatmul.mubr.f32.gmra.mrb[0].mxu0 %v2779
    %v3114 = vpop.f32.mrb[0].mxu0
    %v3115 = vadd.f32 %v2664, %v3114
    %v3116 = vpop.f32.mrb[0].mxu0
    %3117 = vmatprep.mubr.f32.mxu0 0.0
    %3118 = vmatmul.mubr.f32.gmra.mrb[0].mxu0 %v2782
    %v3119 = vpop.f32.mrb[0].mxu0
    %v3120 = vadd.f32 %v2664, %v3119
    %v3121 = vpop.f32.mrb[0].mxu0
    %3122 = vmatprep.mubr.f32.mxu0 0.0
    %3123 = vmatmul.mubr.f32.gmra.mrb[0].mxu0 %v2785
    %v3124 = vpop.f32.mrb[0].mxu0
    %v3125 = vadd.f32 %v2664, %v3124
    %v3126 = vpop.f32.mrb[0].mxu0
    %3127 = vmatprep.mubr.f32.mxu0 0.0
    %3128 = vmatmul.mubr.f32.gmra.mrb[0].mxu0 %v2788
    %v3129 = vpop.f32.mrb[0].mxu0
    %v3130 = vadd.f32 %v2664, %v3129
    %v3131 = vpop.f32.mrb[0].mxu0
    %3132 = vmatprep.mubr.f32.mxu0 0.0
    %3133 = vmatmul.mubr.f32.gmra.mrb[0].mxu0 %v2791
    %v3134 = vpop.f32.mrb[0].mxu0
    %v3135 = vadd.f32 %v2664, %v3134
    %v3136 = vpop.f32.mrb[0].mxu0
    %3137 = vmatprep.mubr.f32.mxu0 0.0
    %3138 = vmatmul.mubr.f32.gmra.mrb[0].mxu0 %v2794
    %v3139 = vpop.f32.mrb[0].mxu0
    %v3140 = vadd.f32 %v2664, %v3139
    %v3141 = vpop.f32.mrb[0].mxu0
    %3142 = vmatprep.mubr.f32.mxu0 0.0
    %3143 = vmatmul.mubr.f32.gmra.mrb[0].mxu0 %v2797
    %v3144 = vpop.f32.mrb[0].mxu0
    %v3145 = vadd.f32 %v2664, %v3144
    %v3146 = vpop.f32.mrb[0].mxu0
    %3147 = vmatprep.mubr.f32.mxu0 0.0
    %3148 = vmatmul.mubr.f32.gmra.mrb[0].mxu0 %v2800
    %v3149 = vpop.f32.mrb[0].mxu0
    %v3150 = vadd.f32 %v2664, %v3149
    %v3151 = vpop.f32.mrb[0].mxu0
    %3152 = vmatprep.mubr.f32.mxu0 0.0
    %3153 = vmatmul.mubr.f32.gmra.mrb[0].mxu0 %v2803
    %v3154 = vpop.f32.mrb[0].mxu0
    %v3155 = vadd.f32 %v2664, %v3154
    %v3156 = vpop.f32.mrb[0].mxu0
    %3157 = vmatprep.mubr.f32.mxu0 0.0
    %3158 = vmatmul.mubr.f32.gmra.mrb[0].mxu0 %v2806
    %v3159 = vpop.f32.mrb[0].mxu0
    %v3160 = vadd.f32 %v2664, %v3159
    %v3161 = vpop.f32.mrb[0].mxu0
    %3162 = vmatprep.mubr.f32.mxu0 0.0
    %3163 = vmatmul.mubr.f32.gmra.mrb[0].mxu0 %v2809
    %v3164 = vpop.f32.mrb[0].mxu0
    %v3165 = vadd.f32 %v2664, %v3164
    %v3166 = vpop.f32.mrb[0].mxu0
    %3167 = vmatprep.mubr.f32.mxu0 0.0
    %3168 = vmatmul.mubr.f32.gmra.mrb[0].mxu0 %v2812
    %v3169 = vpop.f32.mrb[0].mxu0
    %v3170 = vadd.f32 %v2664, %v3169
    %v3171 = vpop.f32.mrb[0].mxu0
    %3172 = vmatprep.mubr.f32.mxu0 0.0
    %3173 = vmatmul.mubr.f32.gmra.mrb[0].mxu0 %v2815
    %v3174 = vpop.f32.mrb[0].mxu0
    %v3175 = vadd.f32 %v2664, %v3174
    %v3176 = vpop.f32.mrb[0].mxu0
    %3177 = vmatprep.mubr.f32.mxu0 0.0
    %3178 = vmatmul.mubr.f32.gmra.mrb[0].mxu0 %v2818
    %v3179 = vpop.f32.mrb[0].mxu0
    %v3180 = vadd.f32 %v2664, %v3179
    %v3181 = vpop.f32.mrb[0].mxu0
    %3182 = vmatprep.mubr.f32.mxu0 0.0
    %3183 = vmatmul.mubr.f32.gmra.mrb[0].mxu0 %v2821
    %v3184 = vpop.f32.mrb[0].mxu0
    %v3185 = vadd.f32 %v2664, %v3184
    %v3186 = vpop.f32.mrb[0].mxu0
    %3187 = vmatprep.mubr.f32.mxu0 0.0
    %3188 = vmatmul.mubr.f32.gmra.mrb[0].mxu0 %v2824
    %v3189 = vpop.f32.mrb[0].mxu0
    %v3190 = vadd.f32 %v2664, %v3189
    %v3191 = vpop.f32.mrb[0].mxu0
    %3192 = vmatprep.mubr.f32.mxu0 0.0
    %3193 = vmatmul.mubr.f32.gmra.mrb[0].mxu0 %v2827
    %v3194 = vpop.f32.mrb[0].mxu0
    %v3195 = vadd.f32 %v2664, %v3194
    %v3196 = vpop.f32.mrb[0].mxu0
    %3197 = vmatprep.mubr.f32.mxu0 0.0
    %3198 = vmatmul.mubr.f32.gmra.mrb[0].mxu0 %v2830
    %v3199 = vpop.f32.mrb[0].mxu0
    %v3200 = vadd.f32 %v2664, %v3199
    %v3201 = vpop.f32.mrb[0].mxu0
    %3202 = vmatprep.mubr.f32.mxu0 0.0
    %3203 = vmatmul.mubr.f32.gmra.mrb[0].mxu0 %v2833
    %v3204 = vpop.f32.mrb[0].mxu0
    %v3205 = vadd.f32 %v2664, %v3204
    %v3206 = vpop.f32.mrb[0].mxu0
    %3207 = vmatprep.mubr.f32.mxu0 0.0
    %3208 = vmatmul.mubr.f32.gmra.mrb[0].mxu0 %v2836
    %v3209 = vpop.f32.mrb[0].mxu0
    %v3210 = vadd.f32 %v2664, %v3209
    %v3211 = vpop.f32.mrb[0].mxu0
    %3212 = vmatprep.mubr.f32.mxu0 0.0
    %3213 = vmatmul.mubr.f32.gmra.mrb[0].mxu0 %v2839
    %v3214 = vpop.f32.mrb[0].mxu0
    %v3215 = vadd.f32 %v2664, %v3214
    %v3216 = vpop.f32.mrb[0].mxu0
    %3217 = vmatprep.mubr.f32.mxu0 0.0
    %3218 = vmatmul.mubr.f32.gmra.mrb[0].mxu0 %v2842
    %v3219 = vpop.f32.mrb[0].mxu0
    %v3220 = vadd.f32 %v2664, %v3219
    %v3221 = vpop.f32.mrb[0].mxu0
    %3222 = vmatprep.mubr.f32.mxu0 0.0
    %3223 = vmatmul.mubr.f32.gmra.mrb[0].mxu0 %v2845
    %v3224 = vpop.f32.mrb[0].mxu0
    %v3225 = vadd.f32 %v2664, %v3224
    %v3226 = vpop.f32.mrb[0].mxu0
    %3227 = vmatprep.mubr.f32.mxu0 0.0
    %3228 = vmatmul.mubr.f32.gmra.mrb[0].mxu0 %v2848
    %v3229 = vpop.f32.mrb[0].mxu0
    %v3230 = vadd.f32 %v2664, %v3229
    %v3231 = vpop.f32.mrb[0].mxu0
    %3232 = vmatprep.mubr.f32.mxu0 0.0
    %3233 = vmatmul.mubr.f32.gmra.mrb[0].mxu0 %v2851
    %v3234 = vpop.f32.mrb[0].mxu0
    %v3235 = vadd.f32 %v2664, %v3234
    %v3236 = vpop.f32.mrb[0].mxu0
    %3237 = vmatprep.mubr.f32.mxu0 0.0
    %3238 = vmatmul.mubr.f32.gmra.mrb[0].mxu0 %v2854
    %v3239 = vpop.f32.mrb[0].mxu0
    %v3240 = vadd.f32 %v2664, %v3239
    %v3241 = vpop.f32.mrb[0].mxu0
    %3242 = vmatprep.mubr.f32.mxu0 0.0
    %3243 = vmatmul.mubr.f32.gmra.mrb[0].mxu0 %v2857
    %v3244 = vpop.f32.mrb[0].mxu0
    %v3245 = vadd.f32 %v2664, %v3244
    %v3246 = vpop.f32.mrb[0].mxu0
    %3247 = vdwg.mxu0
    %v3248 = vmax.f32 %v2930, 0.0
    %v3249 = vmax.f32 %v2935, 0.0
    %v3250 = vmax.f32 %v2940, 0.0
    %v3251 = vmax.f32 %v2945, 0.0
    %v3252 = vmax.f32 %v2950, 0.0
    %v3253 = vmax.f32 %v2955, 0.0
    %v3254 = vmax.f32 %v2960, 0.0
    %v3255 = vmax.f32 %v2965, 0.0
    %v3256 = vmax.f32 %v2970, 0.0
    %v3257 = vmax.f32 %v2975, 0.0
    %v3258 = vmax.f32 %v2980, 0.0
    %v3259 = vmax.f32 %v2985, 0.0
    %v3260 = vmax.f32 %v2990, 0.0
    %v3261 = vmax.f32 %v2995, 0.0
    %v3262 = vmax.f32 %v3000, 0.0
    %v3263 = vmax.f32 %v3005, 0.0
    %v3264 = vmax.f32 %v3010, 0.0
    %v3265 = vmax.f32 %v3015, 0.0
    %v3266 = vmax.f32 %v3020, 0.0
    %v3267 = vmax.f32 %v3025, 0.0
    %v3268 = vmax.f32 %v3030, 0.0
    %v3269 = vmax.f32 %v3035, 0.0
    %v3270 = vmax.f32 %v3040, 0.0
    %v3271 = vmax.f32 %v3045, 0.0
    %v3272 = vmax.f32 %v3050, 0.0
    %v3273 = vmax.f32 %v3055, 0.0
    %v3274 = vmax.f32 %v3060, 0.0
    %v3275 = vmax.f32 %v3065, 0.0
    %v3276 = vmax.f32 %v3070, 0.0
    %v3277 = vmax.f32 %v3075, 0.0
    %v3278 = vmax.f32 %v3080, 0.0
    %v3279 = vmax.f32 %v3085, 0.0
    %v3280 = vmax.f32 %v3090, 0.0
    %v3281 = vmax.f32 %v3095, 0.0
    %v3282 = vmax.f32 %v3100, 0.0
    %v3283 = vmax.f32 %v3105, 0.0
    %v3284 = vmax.f32 %v3110, 0.0
    %v3285 = vmax.f32 %v3115, 0.0
    %v3286 = vmax.f32 %v3120, 0.0
    %v3287 = vmax.f32 %v3125, 0.0
    %v3288 = vmax.f32 %v3130, 0.0
    %v3289 = vmax.f32 %v3135, 0.0
    %v3290 = vmax.f32 %v3140, 0.0
    %v3291 = vmax.f32 %v3145, 0.0
    %v3292 = vmax.f32 %v3150, 0.0
    %v3293 = vmax.f32 %v3155, 0.0
    %v3294 = vmax.f32 %v3160, 0.0
    %v3295 = vmax.f32 %v3165, 0.0
    %v3296 = vmax.f32 %v3170, 0.0
    %v3297 = vmax.f32 %v3175, 0.0
    %v3298 = vmax.f32 %v3180, 0.0
    %v3299 = vmax.f32 %v3185, 0.0
    %v3300 = vmax.f32 %v3190, 0.0
    %v3301 = vmax.f32 %v3195, 0.0
    %v3302 = vmax.f32 %v3200, 0.0
    %v3303 = vmax.f32 %v3205, 0.0
    %v3304 = vmax.f32 %v3210, 0.0
    %v3305 = vmax.f32 %v3215, 0.0
    %v3306 = vmax.f32 %v3220, 0.0
    %v3307 = vmax.f32 %v3225, 0.0
    %v3308 = vmax.f32 %v3230, 0.0
    %v3309 = vmax.f32 %v3235, 0.0
    %v3310 = vmax.f32 %v3240, 0.0
    %v3311 = vmax.f32 %v3245, 0.0
    %vm3312 = vcmask 261120
    %v3313 = vsel %vm3312, %v3248, 0.0
    %v3314 = vsel %vm3312, %v3249, 0.0
    %v3315 = vadd.f32 %v3313, %v3314
    %v3316 = vsel %vm3312, %v3250, 0.0
    %v3317 = vadd.f32 %v3315, %v3316
    %v3318 = vsel %vm3312, %v3251, 0.0
    %v3319 = vadd.f32 %v3317, %v3318
    %v3320 = vsel %vm3312, %v3252, 0.0
    %v3321 = vadd.f32 %v3319, %v3320
    %v3322 = vsel %vm3312, %v3253, 0.0
    %v3323 = vadd.f32 %v3321, %v3322
    %v3324 = vsel %vm3312, %v3254, 0.0
    %v3325 = vadd.f32 %v3323, %v3324
    %v3326 = vsel %vm3312, %v3255, 0.0
    %v3327 = vadd.f32 %v3325, %v3326
    %v3328 = vsel %vm3312, %v3256, 0.0
    %v3329 = vadd.f32 %v3327, %v3328
    %v3330 = vsel %vm3312, %v3257, 0.0
    %v3331 = vadd.f32 %v3329, %v3330
    %v3332 = vsel %vm3312, %v3258, 0.0
    %v3333 = vadd.f32 %v3331, %v3332
    %v3334 = vsel %vm3312, %v3259, 0.0
    %v3335 = vadd.f32 %v3333, %v3334
    %v3336 = vsel %vm3312, %v3260, 0.0
    %v3337 = vadd.f32 %v3335, %v3336
    %v3338 = vsel %vm3312, %v3261, 0.0
    %v3339 = vadd.f32 %v3337, %v3338
    %v3340 = vsel %vm3312, %v3262, 0.0
    %v3341 = vadd.f32 %v3339, %v3340
    %v3342 = vsel %vm3312, %v3263, 0.0
    %v3343 = vadd.f32 %v3341, %v3342
    %v3344 = vsel %vm3312, %v3264, 0.0
    %v3345 = vadd.f32 %v3343, %v3344
    %v3346 = vsel %vm3312, %v3265, 0.0
    %v3347 = vadd.f32 %v3345, %v3346
    %v3348 = vsel %vm3312, %v3266, 0.0
    %v3349 = vadd.f32 %v3347, %v3348
    %v3350 = vsel %vm3312, %v3267, 0.0
    %v3351 = vadd.f32 %v3349, %v3350
    %v3352 = vsel %vm3312, %v3268, 0.0
    %v3353 = vadd.f32 %v3351, %v3352
    %v3354 = vsel %vm3312, %v3269, 0.0
    %v3355 = vadd.f32 %v3353, %v3354
    %v3356 = vsel %vm3312, %v3270, 0.0
    %v3357 = vadd.f32 %v3355, %v3356
    %v3358 = vsel %vm3312, %v3271, 0.0
    %v3359 = vadd.f32 %v3357, %v3358
    %v3360 = vsel %vm3312, %v3272, 0.0
    %v3361 = vadd.f32 %v3359, %v3360
    %v3362 = vsel %vm3312, %v3273, 0.0
    %v3363 = vadd.f32 %v3361, %v3362
    %v3364 = vsel %vm3312, %v3274, 0.0
    %v3365 = vadd.f32 %v3363, %v3364
    %v3366 = vsel %vm3312, %v3275, 0.0
    %v3367 = vadd.f32 %v3365, %v3366
    %v3368 = vsel %vm3312, %v3276, 0.0
    %v3369 = vadd.f32 %v3367, %v3368
    %v3370 = vsel %vm3312, %v3277, 0.0
    %v3371 = vadd.f32 %v3369, %v3370
    %v3372 = vsel %vm3312, %v3278, 0.0
    %v3373 = vadd.f32 %v3371, %v3372
    %v3374 = vsel %vm3312, %v3279, 0.0
    %v3375 = vadd.f32 %v3373, %v3374
    %v3376 = vrot.slane %v3375, 4
    %v3377 = vadd.f32 %v3375, %v3376
    %v3378 = vrot.slane %v3377, 2
    %v3379 = vadd.f32 %v3377, %v3378
    %v3380 = vrot.slane %v3379, 1
    %v3381 = vadd.f32 %v3379, %v3380
    %v3382 = vsel %vm3312, %v3280, 0.0
    %v3383 = vsel %vm3312, %v3281, 0.0
    %v3384 = vadd.f32 %v3382, %v3383
    %v3385 = vsel %vm3312, %v3282, 0.0
    %v3386 = vadd.f32 %v3384, %v3385
    %v3387 = vsel %vm3312, %v3283, 0.0
    %v3388 = vadd.f32 %v3386, %v3387
    %v3389 = vsel %vm3312, %v3284, 0.0
    %v3390 = vadd.f32 %v3388, %v3389
    %v3391 = vsel %vm3312, %v3285, 0.0
    %v3392 = vadd.f32 %v3390, %v3391
    %v3393 = vsel %vm3312, %v3286, 0.0
    %v3394 = vadd.f32 %v3392, %v3393
    %v3395 = vsel %vm3312, %v3287, 0.0
    %v3396 = vadd.f32 %v3394, %v3395
    %v3397 = vsel %vm3312, %v3288, 0.0
    %v3398 = vadd.f32 %v3396, %v3397
    %v3399 = vsel %vm3312, %v3289, 0.0
    %v3400 = vadd.f32 %v3398, %v3399
    %v3401 = vsel %vm3312, %v3290, 0.0
    %v3402 = vadd.f32 %v3400, %v3401
    %v3403 = vsel %vm3312, %v3291, 0.0
    %v3404 = vadd.f32 %v3402, %v3403
    %v3405 = vsel %vm3312, %v3292, 0.0
    %v3406 = vadd.f32 %v3404, %v3405
    %v3407 = vsel %vm3312, %v3293, 0.0
    %v3408 = vadd.f32 %v3406, %v3407
    %v3409 = vsel %vm3312, %v3294, 0.0
    %v3410 = vadd.f32 %v3408, %v3409
    %v3411 = vsel %vm3312, %v3295, 0.0
    %v3412 = vadd.f32 %v3410, %v3411
    %v3413 = vsel %vm3312, %v3296, 0.0
    %v3414 = vadd.f32 %v3412, %v3413
    %v3415 = vsel %vm3312, %v3297, 0.0
    %v3416 = vadd.f32 %v3414, %v3415
    %v3417 = vsel %vm3312, %v3298, 0.0
    %v3418 = vadd.f32 %v3416, %v3417
    %v3419 = vsel %vm3312, %v3299, 0.0
    %v3420 = vadd.f32 %v3418, %v3419
    %v3421 = vsel %vm3312, %v3300, 0.0
    %v3422 = vadd.f32 %v3420, %v3421
    %v3423 = vsel %vm3312, %v3301, 0.0
    %v3424 = vadd.f32 %v3422, %v3423
    %v3425 = vsel %vm3312, %v3302, 0.0
    %v3426 = vadd.f32 %v3424, %v3425
    %v3427 = vsel %vm3312, %v3303, 0.0
    %v3428 = vadd.f32 %v3426, %v3427
    %v3429 = vsel %vm3312, %v3304, 0.0
    %v3430 = vadd.f32 %v3428, %v3429
    %v3431 = vsel %vm3312, %v3305, 0.0
    %v3432 = vadd.f32 %v3430, %v3431
    %v3433 = vsel %vm3312, %v3306, 0.0
    %v3434 = vadd.f32 %v3432, %v3433
    %v3435 = vsel %vm3312, %v3307, 0.0
    %v3436 = vadd.f32 %v3434, %v3435
    %v3437 = vsel %vm3312, %v3308, 0.0
    %v3438 = vadd.f32 %v3436, %v3437
    %v3439 = vsel %vm3312, %v3309, 0.0
    %v3440 = vadd.f32 %v3438, %v3439
    %v3441 = vsel %vm3312, %v3310, 0.0
    %v3442 = vadd.f32 %v3440, %v3441
    %v3443 = vsel %vm3312, %v3311, 0.0
    %v3444 = vadd.f32 %v3442, %v3443
    %v3445 = vrot.slane %v3444, 4
    %v3446 = vadd.f32 %v3444, %v3445
    %v3447 = vrot.slane %v3446, 2
    %v3448 = vadd.f32 %v3446, %v3447
    %v3449 = vrot.slane %v3448, 1
    %v3450 = vadd.f32 %v3448, %v3449
    %v3451 = vmul.f32 %v3381, 0.00390625
    %v3452 = vmul.f32 %v3450, 0.00390625
    %v3453 = vld [vmem:[%s3] sm:$0xff]
    %v3454 = vld [vmem:[%s3 + $0x8] sm:$0xff]
    %v3455 = vld [vmem:[%s3 + $0x10] sm:$0xff]
    %v3456 = vld [vmem:[%s3 + $0x18] sm:$0xff]
    %v3457 = vld [vmem:[%s4] sm:$0x1]
    %v3459 = vlaneseq
    %v3460 = vshrl.u32 %v3459, 7
    %v3461 = vsub.s32 0, %v3460
    %v3462 = vrot.slane %v3457, %v3461
    %vm3466 = vcmask 1041409
    %v3467 = vsel %vm3466, %v3452, %v3451
    %v3468 = vsel %vm3312, %v3467, 0
    %3470 = vmatprep.subr.mxu0 0.0
    %3471 = vmatpush1.msra.mxu0 %v3453
    %3472 = vmatprep.subr.mxu0 0.0
    %3473 = vmatpush1.msra.mxu0 %v3454
    %3474 = vmatprep.subr.mxu0 0.0
    %3475 = vmatpush1.msra.mxu0 %v3455
    %3476 = vmatprep.subr.mxu0 0.0
    %3477 = vmatpush1.msra.mxu0 %v3456
    %3478 = vmatprep.subr.mxu0 0.0
    %3479 = vmatpush1.msra.mxu0 0.0
    %3480 = vmatprep.subr.mxu0 0.0
    %3481 = vmatpush1.msra.mxu0 0.0
    %3482 = vmatprep.subr.mxu0 0.0
    %3483 = vmatpush1.msra.mxu0 0.0
    %3484 = vmatprep.subr.mxu0 0.0
    %3485 = vmatpush1.msra.mxu0 0.0
    %3486 = vmatprep.subr.mxu0 0.0
    %3487 = vmatpush1.msra.mxu0 0.0
    %3488 = vmatprep.subr.mxu0 0.0
    %3489 = vmatpush1.msra.mxu0 0.0
    %3490 = vmatprep.subr.mxu0 0.0
    %3491 = vmatpush1.msra.mxu0 0.0
    %3492 = vmatprep.subr.mxu0 0.0
    %3493 = vmatpush1.msra.mxu0 0.0
    %3494 = vmatprep.subr.mxu0 0.0
    %3495 = vmatpush1.msra.mxu0 0.0
    %3496 = vmatprep.subr.mxu0 0.0
    %3497 = vmatpush1.msra.mxu0 0.0
    %3498 = vmatprep.subr.mxu0 0.0
    %3499 = vmatpush1.msra.mxu0 0.0
    %3500 = vmatprep.subr.mxu0 0.0
    %3501 = vmatpush1.msra.mxu0 0.0
    %3502 = vmatprep.subr.mxu0 0.0
    %3503 = vmatpush1.msra.mxu0 0.0
    %3504 = vmatprep.subr.mxu0 0.0
    %3505 = vmatpush1.msra.mxu0 0.0
    %3506 = vmatprep.subr.mxu0 0.0
    %3507 = vmatpush1.msra.mxu0 0.0
    %3508 = vmatprep.subr.mxu0 0.0
    %3509 = vmatpush1.msra.mxu0 0.0
    %3510 = vmatprep.subr.mxu0 0.0
    %3511 = vmatpush1.msra.mxu0 0.0
    %3512 = vmatprep.subr.mxu0 0.0
    %3513 = vmatpush1.msra.mxu0 0.0
    %3514 = vmatprep.subr.mxu0 0.0
    %3515 = vmatpush1.msra.mxu0 0.0
    %3516 = vmatprep.subr.mxu0 0.0
    %3517 = vmatpush1.msra.mxu0 0.0
    %3518 = vmatprep.subr.mxu0 0.0
    %3519 = vmatpush1.msra.mxu0 0.0
    %3520 = vmatprep.subr.mxu0 0.0
    %3521 = vmatpush1.msra.mxu0 0.0
    %3522 = vmatprep.subr.mxu0 0.0
    %3523 = vmatpush1.msra.mxu0 0.0
    %3524 = vmatprep.subr.mxu0 0.0
    %3525 = vmatpush1.msra.mxu0 0.0
    %3526 = vmatprep.subr.mxu0 0.0
    %3527 = vmatpush1.msra.mxu0 0.0
    %3528 = vmatprep.subr.mxu0 0.0
    %3529 = vmatpush1.msra.mxu0 0.0
    %3530 = vmatprep.subr.mxu0 0.0
    %3531 = vmatpush1.msra.mxu0 0.0
    %3532 = vmatprep.subr.mxu0 0.0
    %3533 = vmatpush1.msra.mxu0 0.0
    %3534 = vmatprep.mubr.f32.mxu0 0.0
    %3535 = vmatmul.mubr.f32.gmra.mrb[0].mxu0 %v3468
    %v3536 = vpop.f32.mrb[0].mxu0
    %v3537 = vadd.f32 %v3462, %v3536
    %v3538 = vpop.f32.mrb[0].mxu0
    %3539 = vdwg.mxu0
    %3540 = vst [vmem:[#allocation2] sm:$0x3] %v3537
    // Predicated region
    $region22: #{tpu_custom_call.1} parent=1 // pred_check
      _
    $region23: #{tpu_custom_call.1} parent=1 // pred_check_branch
      %3542 = sbr.rel (0) target = $region25
    $region24: #{tpu_custom_call.1} parent=1 // pred_region
      %s3544 = ssub.s32 32, 32
      %3545 = vsyncadd [#allocation3], %s3544
      %s3547 = sshll.u32 [#allocation2], 4
      %s3548 = int_to_ptr.vmem [resolvable:$true] %s3547
      %3550 = dma.vmem_to_hbm [thread:$0]  %s3548, 32, %s5, [#allocation3]
    $region25: #{tpu_custom_call.1} parent=1 // pred_fallthru
      _
    // Predicated region
    $region26: #{tpu_custom_call.1} parent=1 // pred_check
      _
    $region27: #{tpu_custom_call.1} parent=1 // pred_check_branch
      %3552 = sbr.rel (0) target = $region29
    $region28: #{tpu_custom_call.1} parent=1 // pred_region
      %3553 = dma.done [#allocation3], 32
    $region29: #{tpu_custom_call.1} parent=1 // pred_fallthru
      _
    %3554 = vsyncpa [#allocation3], 1

</llo_original>
